<compile_context>
chip_gen: v5e
topology: v5e:2x2
jax: 0.10.0
libtpu: 0.0.40
codegen_flags: <defaults>
</compile_context>

<pallas_src>
import functools

import jax
import jax.numpy as jnp
from jax.experimental import pallas as pl
from jax.experimental.pallas import tpu as pltpu


# ----------------------------------------------------------------------------- kernel
def gated_masked_conv_kernel(
    vmap_ref,     # (Cin, HW + 2W+1) compute dtype; [2W+1 zero lanes | v_map flat]
    hmap_ref,     # (Cin, HW + 1)    compute dtype; [1 zero lane     | h_map flat]
    colmask_ref,  # (2, HW)          compute dtype; row0: (w>=1), row1: (w<=W-2)
    wv_ref,       # (6, 2D, Cin)     per-tap vertical weights, tap t = kh*3 + kw
    bv_ref,       # (2D, 1) f32
    wh_ref,       # (2, 2D, Cin)     per-tap horizontal weights
    bhall_ref,    # (2D, 1) f32      bh + bvh
    wvh_ref,      # (2D, 2D)         1x1 vh weight, (out, in)
    wres_ref,     # (D, D)           1x1 residual weight, (out, in)
    bres_ref,     # (D, 1) f32
    vout_ref,     # (D, HW) f32
    hout_ref,     # (D, HW) f32
    *, W, D,
):
    D2 = 2 * D
    HW = vout_ref.shape[-1]
    pre_v = 2 * W + 1
    cdt = vmap_ref.dtype

    cm = colmask_ref[...]
    mask_l = cm[0:1, :]          # valid where w >= 1      (taps with kw == 0)
    mask_r = cm[1:2, :]          # valid where w <= W - 2  (taps with kw == 2)

    # ---- vertical stack: 6 causal taps = 6 accumulating MXU matmuls (item 5) ----
    # Output (h, w), tap (kh, kw) reads v_map[h-2+kh, w-1+kw].  On the zero-pre-padded
    # flat map that is the static lane slice at pre_v + (kh-2)*W + (kw-1); the pre-pad
    # zeros cover the top rows and the column masks kill the row-wrap lanes.
    v_pre = jnp.zeros((D2, HW), jnp.float32)
    for kh in range(2):
        for kw in range(3):
            start = pre_v + (kh - 2) * W + (kw - 1)
            tap = vmap_ref[:, pl.ds(start, HW)]            # (Cin, HW), static slice
            if kw == 0:
                tap = tap * mask_l
            elif kw == 2:
                tap = tap * mask_r
            v_pre = v_pre + jnp.dot(wv_ref[kh * 3 + kw], tap,
                                    preferred_element_type=jnp.float32)
    v_pre = v_pre + bv_ref[...]

    # PyTorch's v_pad2 + [:-1] makes output row h == 0 exactly zero (bias included):
    # one (1, HW) lane-iota compare (item 7), broadcast over the 2D channels.
    lane = jax.lax.broadcasted_iota(jnp.int32, (1, HW), 1)
    v_out = v_pre * (lane >= W).astype(jnp.float32)

    # Gating in f32.  NOTE(item 6): keep D a multiple of the sublane pack
    # (8 for f32 / 16 for bf16) in production so these half-slices are free views.
    vout_ref[...] = (jnp.tanh(v_out[:D]) * jax.nn.sigmoid(v_out[D:])
                     ).astype(vout_ref.dtype)

    # ---- horizontal stack: 2 taps + 1x1 vh conv, all accumulating matmuls (item 1) ----
    h_tap1 = hmap_ref[:, pl.ds(1, HW)]                     # kw == 1 tap == h_map
    h_pre = jnp.dot(wh_ref[0], hmap_ref[:, pl.ds(0, HW)] * mask_l,
                    preferred_element_type=jnp.float32)
    h_pre = h_pre + jnp.dot(wh_ref[1], h_tap1, preferred_element_type=jnp.float32)
    h_pre = h_pre + jnp.dot(wvh_ref[...], v_out.astype(cdt),
                            preferred_element_type=jnp.float32)
    h_pre = h_pre + bhall_ref[...]
    h_g = jnp.tanh(h_pre[:D]) * jax.nn.sigmoid(h_pre[D:])

    # ---- 1x1 residual conv + mask-'B' skip (skip = h_tap1 == h_map; needs D == Cin) ----
    h_res = (jnp.dot(wres_ref[...], h_g.astype(cdt), preferred_element_type=jnp.float32)
             + bres_ref[...] + h_tap1.astype(jnp.float32))
    hout_ref[...] = h_res.astype(hout_ref.dtype)


# ----------------------------------------------------------------------------- wrapper
@functools.partial(jax.jit, static_argnames=("mask", "compute_dtype"))
def gated_masked_conv2d(v_map, h_map, params, mask="B", compute_dtype=jnp.bfloat16):
    """v_map, h_map: NCHW float32. Returns (v_map_out, h_map_out) in NCHW float32."""
    assert mask == "B"  # TODO(synk): mask='A' left-shift path not wired into this kernel
    N, Cin, H, W = v_map.shape
    HW = H * W
    D2 = params["bv"].shape[0]
    D = D2 // 2
    assert D == Cin, "mask='B' residual skip requires out_dim == in_dim"

    cdt = jnp.dtype(compute_dtype)
    cbytes = cdt.itemsize
    pre_v, pre_h = 2 * W + 1, 1

    # Plain maps, flattened to lane-dense (Cin, HW) and zero-PRE-padded so every conv
    # tap is a static in-kernel lane slice (no 6x/2x im2col through HBM -- item 5).
    v_flat = jnp.pad(v_map.reshape(N, Cin, HW).astype(cdt), ((0, 0), (0, 0), (pre_v, 0)))
    h_flat = jnp.pad(h_map.reshape(N, Cin, HW).astype(cdt), ((0, 0), (0, 0), (pre_h, 0)))

    # Column-boundary masks (kill lanes where a +/-1 column tap wraps across rows).
    col = jnp.arange(HW, dtype=jnp.int32) % W
    colmask = jnp.stack([col >= 1, col <= W - 2]).astype(cdt)         # (2, HW)

    # Weights prepped per tap as (out, in); biases stay f32 (added to f32 accumulator).
    wv_taps = jnp.transpose(params["wv"], (0, 1, 3, 2)).reshape(6, D2, Cin).astype(cdt)
    wh_taps = jnp.transpose(params["wh"], (0, 2, 1)).astype(cdt)      # (2, 2D, Cin)
    wvh = params["wvh"].T.astype(cdt)                                 # (2D, 2D) (out, in)
    wres = params["wres"].T.astype(cdt)                               # (D, D)   (out, in)
    bv = params["bv"].reshape(D2, 1).astype(jnp.float32)
    bh_all = (params["bh"] + params["bvh"]).reshape(D2, 1).astype(jnp.float32)
    bres = params["bres"].reshape(D, 1).astype(jnp.float32)

    in_specs = [
        pl.BlockSpec((None, Cin, HW + pre_v), lambda n: (n, 0, 0)),
        pl.BlockSpec((None, Cin, HW + pre_h), lambda n: (n, 0, 0)),
        pl.BlockSpec((2, HW), lambda n: (0, 0)),
        pl.BlockSpec((6, D2, Cin), lambda n: (0, 0, 0)),
        pl.BlockSpec((D2, 1), lambda n: (0, 0)),
        pl.BlockSpec((2, D2, Cin), lambda n: (0, 0, 0)),
        pl.BlockSpec((D2, 1), lambda n: (0, 0)),
        pl.BlockSpec((D2, D2), lambda n: (0, 0)),
        pl.BlockSpec((D, D), lambda n: (0, 0)),
        pl.BlockSpec((D, 1), lambda n: (0, 0)),
    ]
    out_specs = (
        pl.BlockSpec((None, D, HW), lambda n: (n, 0, 0)),
        pl.BlockSpec((None, D, HW), lambda n: (n, 0, 0)),
    )

    # Explicit VMEM budget (item 4): double-buffered per-step blocks + weights + f32
    # temporaries, clamped to [16 MiB, 48 MiB] so the same code respects v5e's 16 MiB
    # scoped default and leaves headroom under v7x's 64 MiB physical VMEM.
    blk_in = (Cin * (HW + pre_v) + Cin * (HW + pre_h) + 2 * HW) * cbytes
    blk_out = 2 * D * HW * 4
    blk_w = (6 * D2 * Cin + 2 * D2 * Cin + D2 * D2 + D * D) * cbytes + (2 * D2 + D) * 4
    scratch = (2 * D2 * HW + 2 * Cin * HW + 2 * D * HW) * 4
    vmem_limit = int(min(48 << 20,
                         max(16 << 20,
                             2 * (blk_in + blk_out) + blk_w + scratch + (2 << 20))))

    flops = 2 * N * HW * (6 * Cin * D2 + 2 * Cin * D2 + D2 * D2 + D * D)
    transcendentals = 4 * N * HW * D
    bytes_accessed = ((v_flat.size + h_flat.size + colmask.size + wv_taps.size
                       + wh_taps.size + wvh.size + wres.size) * cbytes
                      + (bv.size + bh_all.size + bres.size) * 4
                      + 2 * N * D * HW * 4)

    v_out_flat, h_out_flat = pl.pallas_call(
        functools.partial(gated_masked_conv_kernel, W=W, D=D),
        out_shape=(
            jax.ShapeDtypeStruct((N, D, HW), jnp.float32),
            jax.ShapeDtypeStruct((N, D, HW), jnp.float32),
        ),
        grid=(N,),
        in_specs=in_specs,
        out_specs=out_specs,
        compiler_params=pltpu.CompilerParams(
            dimension_semantics=("parallel",),
            vmem_limit_bytes=vmem_limit),
        cost_estimate=pl.CostEstimate(flops=flops,
                                      transcendentals=transcendentals,
                                      bytes_accessed=bytes_accessed),
    )(v_flat, h_flat, colmask, wv_taps, bv, wh_taps, bh_all, wvh, wres, bres)

    # (N, D, HW) -> NCHW, reshape only (no transpose)
    return v_out_flat.reshape(N, D, H, W), h_out_flat.reshape(N, D, H, W)


# --------------------------------------------------- reference (pure JAX, mirrors PyTorch)
def reference_forward(v_map, h_map, params):
    D2 = params["bv"].shape[0]
    D = D2 // 2

    def conv(x, w_oihw, b):
        y = jax.lax.conv_general_dilated(
            x, w_oihw, (1, 1), "VALID",
            dimension_numbers=("NCHW", "OIHW", "NCHW"))
        return y + b[None, :, None, None]

    wv = jnp.transpose(params["wv"], (3, 2, 0, 1))                 # (2D, Cin, 2, 3)
    wvh = jnp.transpose(params["wvh"], (1, 0))[:, :, None, None]   # (2D, 2D, 1, 1)
    wh = jnp.transpose(params["wh"], (2, 1, 0))[:, :, None, :]     # (2D, Cin, 1, 2)
    wres = jnp.transpose(params["wres"], (1, 0))[:, :, None, None] # (D, D, 1, 1)

    v_p1 = jnp.pad(v_map, ((0, 0), (0, 0), (1, 0), (1, 1)))        # v_pad1
    v_c = conv(v_p1, wv, params["bv"])
    v_out = jnp.pad(v_c, ((0, 0), (0, 0), (1, 0), (0, 0)))[:, :, :-1, :]   # v_pad2 + crop
    v_map_out = jnp.tanh(v_out[:, :D]) * jax.nn.sigmoid(v_out[:, D:])

    vh = conv(v_out, wvh, params["bvh"])
    h_p1 = jnp.pad(h_map, ((0, 0), (0, 0), (0, 0), (1, 0)))        # h_pad1
    h_out = conv(h_p1, wh, params["bh"]) + vh
    h_g = jnp.tanh(h_out[:, :D]) * jax.nn.sigmoid(h_out[:, D:])
    h_map_out = conv(h_g, wres, params["bres"]) + h_map            # mask 'B' skip
    return v_map_out, h_map_out


# ----------------------------------------------------------------------------- main
if __name__ == "__main__":
    N, Cin, H, W = 2, 4, 16, 16
    D = Cin  # out_dim=None -> dim = in_dim
    D2 = 2 * D

    key = jax.random.PRNGKey(0)
    ks = jax.random.split(key, 10)
    params = {
        "wv":   0.1 * jax.random.normal(ks[0], (2, 3, Cin, D2), jnp.float32),
        "bv":   0.1 * jax.random.normal(ks[1], (D2,), jnp.float32),
        "wvh":  0.1 * jax.random.normal(ks[2], (D2, D2), jnp.float32),
        "bvh":  0.1 * jax.random.normal(ks[3], (D2,), jnp.float32),
        "wh":   0.1 * jax.random.normal(ks[4], (2, Cin, D2), jnp.float32),
        "bh":   0.1 * jax.random.normal(ks[5], (D2,), jnp.float32),
        "wres": 0.1 * jax.random.normal(ks[6], (D, D), jnp.float32),
        "bres": 0.1 * jax.random.normal(ks[7], (D,), jnp.float32),
    }
    v_map = jax.random.normal(ks[8], (N, Cin, H, W), jnp.float32)
    h_map = jax.random.normal(ks[9], (N, Cin, H, W), jnp.float32)

    v_ref, h_ref = reference_forward(v_map, h_map, params)

    # 1) f32 compute path: tight structural check.
    v32, h32 = gated_masked_conv2d(v_map, h_map, params, mask="B",
                                   compute_dtype=jnp.float32)
    jax.block_until_ready((v32, h32))
    assert v32.shape == (N, D, H, W) and h32.shape == (N, D, H, W)
    assert jnp.allclose(v32, v_ref, atol=1e-4, rtol=1e-4), "v_map_out mismatch (f32)"
    assert jnp.allclose(h32, h_ref, atol=1e-4, rtol=1e-4), "h_map_out mismatch (f32)"

    # 2) bf16 MXU-operand path (feedback item 2): tolerance retuned for bf16 operands.
    vbf, hbf = gated_masked_conv2d(v_map, h_map, params, mask="B",
                                   compute_dtype=jnp.bfloat16)
    jax.block_until_ready((vbf, hbf))
    assert jnp.allclose(vbf, v_ref, atol=5e-2, rtol=5e-2), "v_map_out mismatch (bf16)"
    assert jnp.allclose(hbf, h_ref, atol=5e-2, rtol=5e-2), "h_map_out mismatch (bf16)"

    print("KERNEL_OK")
</pallas_src>

<mosaic_0001>
module attributes {stable_mosaic.version = 11 : i64} {
  func.func @gated_masked_conv_kernel(%arg0: i32, %arg1: memref<1x4x289xf32, #tpu.memory_space<vmem>>, %arg2: memref<1x4x257xf32, #tpu.memory_space<vmem>>, %arg3: memref<2x256xf32, #tpu.memory_space<vmem>>, %arg4: memref<6x8x4xf32, #tpu.memory_space<vmem>>, %arg5: memref<8x1xf32, #tpu.memory_space<vmem>>, %arg6: memref<2x8x4xf32, #tpu.memory_space<vmem>>, %arg7: memref<8x1xf32, #tpu.memory_space<vmem>>, %arg8: memref<8x8xf32, #tpu.memory_space<vmem>>, %arg9: memref<4x4xf32, #tpu.memory_space<vmem>>, %arg10: memref<4x1xf32, #tpu.memory_space<vmem>>, %arg11: memref<1x4x256xf32, #tpu.memory_space<vmem>>, %arg12: memref<1x4x256xf32, #tpu.memory_space<vmem>>) attributes {dimension_semantics = [#tpu.dimension_semantics<parallel>], iteration_bounds = array<i64: 2>, scalar_prefetch = 0 : i64, scratch_operands = 0 : i64, tpu.core_type = #tpu.core_type<tc>, window_params = [{transform_indices = @transform_0, window_bounds = array<i64: 1, 4, 289>}, {transform_indices = @transform_1, window_bounds = array<i64: 1, 4, 257>}, {pipeline_mode = #tpu.pipeline_mode<synchronous>, transform_indices = @transform_2, window_bounds = array<i64: 2, 256>}, {pipeline_mode = #tpu.pipeline_mode<synchronous>, transform_indices = @transform_3, window_bounds = array<i64: 6, 8, 4>}, {pipeline_mode = #tpu.pipeline_mode<synchronous>, transform_indices = @transform_4, window_bounds = array<i64: 8, 1>}, {pipeline_mode = #tpu.pipeline_mode<synchronous>, transform_indices = @transform_5, window_bounds = array<i64: 2, 8, 4>}, {pipeline_mode = #tpu.pipeline_mode<synchronous>, transform_indices = @transform_6, window_bounds = array<i64: 8, 1>}, {pipeline_mode = #tpu.pipeline_mode<synchronous>, transform_indices = @transform_7, window_bounds = array<i64: 8, 8>}, {pipeline_mode = #tpu.pipeline_mode<synchronous>, transform_indices = @transform_8, window_bounds = array<i64: 4, 4>}, {pipeline_mode = #tpu.pipeline_mode<synchronous>, transform_indices = @transform_9, window_bounds = array<i64: 4, 1>}, {transform_indices = @transform_10, window_bounds = array<i64: 1, 4, 256>}, {transform_indices = @transform_11, window_bounds = array<i64: 1, 4, 256>}]} {
    %c0 = arith.constant 0 : index
    %c0_0 = arith.constant 0 : index
    %0 = vector.load %arg3[%c0, %c0_0] : memref<2x256xf32, #tpu.memory_space<vmem>>, vector<2x256xf32>
    %1 = vector.extract_strided_slice %0 {offsets = [0, 0], sizes = [1, 256], strides = [1, 1]} : vector<2x256xf32> to vector<1x256xf32>
    %2 = vector.extract_strided_slice %0 {offsets = [1, 0], sizes = [1, 256], strides = [1, 1]} : vector<2x256xf32> to vector<1x256xf32>
    %cst = arith.constant 0.000000e+00 : f32
    %3 = vector.broadcast %cst : f32 to vector<8x256xf32>
    %c0_1 = arith.constant 0 : index
    %c0_2 = arith.constant 0 : index
    %c0_3 = arith.constant 0 : index
    %4 = vector.load %arg1[%c0_1, %c0_2, %c0_3] : memref<1x4x289xf32, #tpu.memory_space<vmem>>, vector<1x4x256xf32>
    %5 = vector.shape_cast %4 : vector<1x4x256xf32> to vector<4x256xf32>
    %6 = vector.broadcast %1 : vector<1x256xf32> to vector<4x256xf32>
    %7 = arith.mulf %5, %6 : vector<4x256xf32>
    %c0_4 = arith.constant 0 : index
    %c0_5 = arith.constant 0 : index
    %c0_6 = arith.constant 0 : index
    %8 = vector.load %arg4[%c0_4, %c0_5, %c0_6] : memref<6x8x4xf32, #tpu.memory_space<vmem>>, vector<1x8x4xf32>
    %9 = vector.shape_cast %8 : vector<1x8x4xf32> to vector<8x4xf32>
    %cst_7 = arith.constant dense<0.000000e+00> : vector<8x256xf32>
    %10 = tpu.matmul %9, %7, %cst_7 {dimension_numbers = #tpu.dot_dimension_numbers<[1], [0], [0], [1], [0, 0, 1, 1], [], []>} : vector<8x4xf32>, vector<4x256xf32>, vector<8x256xf32> -> vector<8x256xf32>
    %11 = arith.addf %3, %10 : vector<8x256xf32>
    %c0_8 = arith.constant 0 : index
    %c0_9 = arith.constant 0 : index
    %c1 = arith.constant 1 : index
    %12 = vector.load %arg1[%c0_8, %c0_9, %c1] : memref<1x4x289xf32, #tpu.memory_space<vmem>>, vector<1x4x256xf32>
    %13 = vector.shape_cast %12 : vector<1x4x256xf32> to vector<4x256xf32>
    %c1_10 = arith.constant 1 : index
    %c0_11 = arith.constant 0 : index
    %c0_12 = arith.constant 0 : index
    %14 = vector.load %arg4[%c1_10, %c0_11, %c0_12] : memref<6x8x4xf32, #tpu.memory_space<vmem>>, vector<1x8x4xf32>
    %15 = vector.shape_cast %14 : vector<1x8x4xf32> to vector<8x4xf32>
    %cst_13 = arith.constant dense<0.000000e+00> : vector<8x256xf32>
    %16 = tpu.matmul %15, %13, %cst_13 {dimension_numbers = #tpu.dot_dimension_numbers<[1], [0], [0], [1], [0, 0, 1, 1], [], []>} : vector<8x4xf32>, vector<4x256xf32>, vector<8x256xf32> -> vector<8x256xf32>
    %17 = arith.addf %11, %16 : vector<8x256xf32>
    %c0_14 = arith.constant 0 : index
    %c0_15 = arith.constant 0 : index
    %c2 = arith.constant 2 : index
    %18 = vector.load %arg1[%c0_14, %c0_15, %c2] : memref<1x4x289xf32, #tpu.memory_space<vmem>>, vector<1x4x256xf32>
    %19 = vector.shape_cast %18 : vector<1x4x256xf32> to vector<4x256xf32>
    %20 = vector.broadcast %2 : vector<1x256xf32> to vector<4x256xf32>
    %21 = arith.mulf %19, %20 : vector<4x256xf32>
    %c2_16 = arith.constant 2 : index
    %c0_17 = arith.constant 0 : index
    %c0_18 = arith.constant 0 : index
    %22 = vector.load %arg4[%c2_16, %c0_17, %c0_18] : memref<6x8x4xf32, #tpu.memory_space<vmem>>, vector<1x8x4xf32>
    %23 = vector.shape_cast %22 : vector<1x8x4xf32> to vector<8x4xf32>
    %cst_19 = arith.constant dense<0.000000e+00> : vector<8x256xf32>
    %24 = tpu.matmul %23, %21, %cst_19 {dimension_numbers = #tpu.dot_dimension_numbers<[1], [0], [0], [1], [0, 0, 1, 1], [], []>} : vector<8x4xf32>, vector<4x256xf32>, vector<8x256xf32> -> vector<8x256xf32>
    %25 = arith.addf %17, %24 : vector<8x256xf32>
    %c0_20 = arith.constant 0 : index
    %c0_21 = arith.constant 0 : index
    %c16 = arith.constant 16 : index
    %26 = vector.load %arg1[%c0_20, %c0_21, %c16] : memref<1x4x289xf32, #tpu.memory_space<vmem>>, vector<1x4x256xf32>
    %27 = vector.shape_cast %26 : vector<1x4x256xf32> to vector<4x256xf32>
    %28 = vector.broadcast %1 : vector<1x256xf32> to vector<4x256xf32>
    %29 = arith.mulf %27, %28 : vector<4x256xf32>
    %c3 = arith.constant 3 : index
    %c0_22 = arith.constant 0 : index
    %c0_23 = arith.constant 0 : index
    %30 = vector.load %arg4[%c3, %c0_22, %c0_23] : memref<6x8x4xf32, #tpu.memory_space<vmem>>, vector<1x8x4xf32>
    %31 = vector.shape_cast %30 : vector<1x8x4xf32> to vector<8x4xf32>
    %cst_24 = arith.constant dense<0.000000e+00> : vector<8x256xf32>
    %32 = tpu.matmul %31, %29, %cst_24 {dimension_numbers = #tpu.dot_dimension_numbers<[1], [0], [0], [1], [0, 0, 1, 1], [], []>} : vector<8x4xf32>, vector<4x256xf32>, vector<8x256xf32> -> vector<8x256xf32>
    %33 = arith.addf %25, %32 : vector<8x256xf32>
    %c0_25 = arith.constant 0 : index
    %c0_26 = arith.constant 0 : index
    %c17 = arith.constant 17 : index
    %34 = vector.load %arg1[%c0_25, %c0_26, %c17] : memref<1x4x289xf32, #tpu.memory_space<vmem>>, vector<1x4x256xf32>
    %35 = vector.shape_cast %34 : vector<1x4x256xf32> to vector<4x256xf32>
    %c4 = arith.constant 4 : index
    %c0_27 = arith.constant 0 : index
    %c0_28 = arith.constant 0 : index
    %36 = vector.load %arg4[%c4, %c0_27, %c0_28] : memref<6x8x4xf32, #tpu.memory_space<vmem>>, vector<1x8x4xf32>
    %37 = vector.shape_cast %36 : vector<1x8x4xf32> to vector<8x4xf32>
    %cst_29 = arith.constant dense<0.000000e+00> : vector<8x256xf32>
    %38 = tpu.matmul %37, %35, %cst_29 {dimension_numbers = #tpu.dot_dimension_numbers<[1], [0], [0], [1], [0, 0, 1, 1], [], []>} : vector<8x4xf32>, vector<4x256xf32>, vector<8x256xf32> -> vector<8x256xf32>
    %39 = arith.addf %33, %38 : vector<8x256xf32>
    %c0_30 = arith.constant 0 : index
    %c0_31 = arith.constant 0 : index
    %c18 = arith.constant 18 : index
    %40 = vector.load %arg1[%c0_30, %c0_31, %c18] : memref<1x4x289xf32, #tpu.memory_space<vmem>>, vector<1x4x256xf32>
    %41 = vector.shape_cast %40 : vector<1x4x256xf32> to vector<4x256xf32>
    %42 = vector.broadcast %2 : vector<1x256xf32> to vector<4x256xf32>
    %43 = arith.mulf %41, %42 : vector<4x256xf32>
    %c5 = arith.constant 5 : index
    %c0_32 = arith.constant 0 : index
    %c0_33 = arith.constant 0 : index
    %44 = vector.load %arg4[%c5, %c0_32, %c0_33] : memref<6x8x4xf32, #tpu.memory_space<vmem>>, vector<1x8x4xf32>
    %45 = vector.shape_cast %44 : vector<1x8x4xf32> to vector<8x4xf32>
    %cst_34 = arith.constant dense<0.000000e+00> : vector<8x256xf32>
    %46 = tpu.matmul %45, %43, %cst_34 {dimension_numbers = #tpu.dot_dimension_numbers<[1], [0], [0], [1], [0, 0, 1, 1], [], []>} : vector<8x4xf32>, vector<4x256xf32>, vector<8x256xf32> -> vector<8x256xf32>
    %47 = arith.addf %39, %46 : vector<8x256xf32>
    %c0_35 = arith.constant 0 : index
    %c0_36 = arith.constant 0 : index
    %48 = vector.load %arg5[%c0_35, %c0_36] : memref<8x1xf32, #tpu.memory_space<vmem>>, vector<8x1xf32>
    %49 = vector.broadcast %48 : vector<8x1xf32> to vector<8x256xf32>
    %50 = arith.addf %47, %49 : vector<8x256xf32>
    %51 = tpu.iota {dimensions = array<i32: 1>} : vector<1x256xi32>
    %c16_i32 = arith.constant 16 : i32
    %52 = vector.broadcast %c16_i32 : i32 to vector<1x256xi32>
    %53 = arith.cmpi sge, %51, %52 : vector<1x256xi32>
    %54 = arith.extui %53 : vector<1x256xi1> to vector<1x256xi32>
    %55 = arith.sitofp %54 : vector<1x256xi32> to vector<1x256xf32>
    %56 = vector.broadcast %55 : vector<1x256xf32> to vector<8x256xf32>
    %57 = arith.mulf %50, %56 : vector<8x256xf32>
    %58 = vector.extract_strided_slice %57 {offsets = [0, 0], sizes = [4, 256], strides = [1, 1]} : vector<8x256xf32> to vector<4x256xf32>
    %59 = math.tanh %58 : vector<4x256xf32>
    %60 = vector.extract_strided_slice %57 {offsets = [4, 0], sizes = [4, 256], strides = [1, 1]} : vector<8x256xf32> to vector<4x256xf32>
    %61 = arith.negf %60 : vector<4x256xf32>
    %62 = math.exp %61 : vector<4x256xf32>
    %cst_37 = arith.constant 1.000000e+00 : f32
    %63 = vector.broadcast %cst_37 : f32 to vector<4x256xf32>
    %64 = arith.addf %63, %62 : vector<4x256xf32>
    %65 = arith.divf %63, %64 : vector<4x256xf32>
    %66 = arith.mulf %59, %65 : vector<4x256xf32>
    %c0_38 = arith.constant 0 : index
    %c0_39 = arith.constant 0 : index
    %c0_40 = arith.constant 0 : index
    %67 = vector.load %arg11[%c0_38, %c0_39, %c0_40] : memref<1x4x256xf32, #tpu.memory_space<vmem>>, vector<1x4x256xf32>
    %68 = vector.shape_cast %67 : vector<1x4x256xf32> to vector<4x256xf32>
    %69 = vector.shape_cast %66 : vector<4x256xf32> to vector<1x4x256xf32>
    tpu.vector_store %arg11[%c0_38, %c0_39, %c0_40], %69 {strides = array<i32>} : memref<1x4x256xf32, #tpu.memory_space<vmem>>, vector<1x4x256xf32>,
    %c0_41 = arith.constant 0 : index
    %c0_42 = arith.constant 0 : index
    %c1_43 = arith.constant 1 : index
    %70 = vector.load %arg2[%c0_41, %c0_42, %c1_43] : memref<1x4x257xf32, #tpu.memory_space<vmem>>, vector<1x4x256xf32>
    %71 = vector.shape_cast %70 : vector<1x4x256xf32> to vector<4x256xf32>
    %c0_44 = arith.constant 0 : index
    %c0_45 = arith.constant 0 : index
    %c0_46 = arith.constant 0 : index
    %72 = vector.load %arg6[%c0_44, %c0_45, %c0_46] : memref<2x8x4xf32, #tpu.memory_space<vmem>>, vector<1x8x4xf32>
    %73 = vector.shape_cast %72 : vector<1x8x4xf32> to vector<8x4xf32>
    %c0_47 = arith.constant 0 : index
    %c0_48 = arith.constant 0 : index
    %c0_49 = arith.constant 0 : index
    %74 = vector.load %arg2[%c0_47, %c0_48, %c0_49] : memref<1x4x257xf32, #tpu.memory_space<vmem>>, vector<1x4x256xf32>
    %75 = vector.shape_cast %74 : vector<1x4x256xf32> to vector<4x256xf32>
    %76 = vector.broadcast %1 : vector<1x256xf32> to vector<4x256xf32>
    %77 = arith.mulf %75, %76 : vector<4x256xf32>
    %cst_50 = arith.constant dense<0.000000e+00> : vector<8x256xf32>
    %78 = tpu.matmul %73, %77, %cst_50 {dimension_numbers = #tpu.dot_dimension_numbers<[1], [0], [0], [1], [0, 0, 1, 1], [], []>} : vector<8x4xf32>, vector<4x256xf32>, vector<8x256xf32> -> vector<8x256xf32>
    %c1_51 = arith.constant 1 : index
    %c0_52 = arith.constant 0 : index
    %c0_53 = arith.constant 0 : index
    %79 = vector.load %arg6[%c1_51, %c0_52, %c0_53] : memref<2x8x4xf32, #tpu.memory_space<vmem>>, vector<1x8x4xf32>
    %80 = vector.shape_cast %79 : vector<1x8x4xf32> to vector<8x4xf32>
    %cst_54 = arith.constant dense<0.000000e+00> : vector<8x256xf32>
    %81 = tpu.matmul %80, %71, %cst_54 {dimension_numbers = #tpu.dot_dimension_numbers<[1], [0], [0], [1], [0, 0, 1, 1], [], []>} : vector<8x4xf32>, vector<4x256xf32>, vector<8x256xf32> -> vector<8x256xf32>
    %82 = arith.addf %78, %81 : vector<8x256xf32>
    %c0_55 = arith.constant 0 : index
    %c0_56 = arith.constant 0 : index
    %83 = vector.load %arg8[%c0_55, %c0_56] : memref<8x8xf32, #tpu.memory_space<vmem>>, vector<8x8xf32>
    %cst_57 = arith.constant dense<0.000000e+00> : vector<8x256xf32>
    %84 = tpu.matmul %83, %57, %cst_57 {dimension_numbers = #tpu.dot_dimension_numbers<[1], [0], [0], [1], [0, 0, 1, 1], [], []>} : vector<8x8xf32>, vector<8x256xf32>, vector<8x256xf32> -> vector<8x256xf32>
    %85 = arith.addf %82, %84 : vector<8x256xf32>
    %c0_58 = arith.constant 0 : index
    %c0_59 = arith.constant 0 : index
    %86 = vector.load %arg7[%c0_58, %c0_59] : memref<8x1xf32, #tpu.memory_space<vmem>>, vector<8x1xf32>
    %87 = vector.broadcast %86 : vector<8x1xf32> to vector<8x256xf32>
    %88 = arith.addf %85, %87 : vector<8x256xf32>
    %89 = vector.extract_strided_slice %88 {offsets = [0, 0], sizes = [4, 256], strides = [1, 1]} : vector<8x256xf32> to vector<4x256xf32>
    %90 = math.tanh %89 : vector<4x256xf32>
    %91 = vector.extract_strided_slice %88 {offsets = [4, 0], sizes = [4, 256], strides = [1, 1]} : vector<8x256xf32> to vector<4x256xf32>
    %92 = arith.negf %91 : vector<4x256xf32>
    %93 = math.exp %92 : vector<4x256xf32>
    %cst_60 = arith.constant 1.000000e+00 : f32
    %94 = vector.broadcast %cst_60 : f32 to vector<4x256xf32>
    %95 = arith.addf %94, %93 : vector<4x256xf32>
    %96 = arith.divf %94, %95 : vector<4x256xf32>
    %97 = arith.mulf %90, %96 : vector<4x256xf32>
    %c0_61 = arith.constant 0 : index
    %c0_62 = arith.constant 0 : index
    %98 = vector.load %arg9[%c0_61, %c0_62] : memref<4x4xf32, #tpu.memory_space<vmem>>, vector<4x4xf32>
    %cst_63 = arith.constant dense<0.000000e+00> : vector<4x256xf32>
    %99 = tpu.matmul %98, %97, %cst_63 {dimension_numbers = #tpu.dot_dimension_numbers<[1], [0], [0], [1], [0, 0, 1, 1], [], []>} : vector<4x4xf32>, vector<4x256xf32>, vector<4x256xf32> -> vector<4x256xf32>
    %c0_64 = arith.constant 0 : index
    %c0_65 = arith.constant 0 : index
    %100 = vector.load %arg10[%c0_64, %c0_65] : memref<4x1xf32, #tpu.memory_space<vmem>>, vector<4x1xf32>
    %101 = vector.broadcast %100 : vector<4x1xf32> to vector<4x256xf32>
    %102 = arith.addf %99, %101 : vector<4x256xf32>
    %103 = arith.addf %102, %71 : vector<4x256xf32>
    %c0_66 = arith.constant 0 : index
    %c0_67 = arith.constant 0 : index
    %c0_68 = arith.constant 0 : index
    %104 = vector.load %arg12[%c0_66, %c0_67, %c0_68] : memref<1x4x256xf32, #tpu.memory_space<vmem>>, vector<1x4x256xf32>
    %105 = vector.shape_cast %104 : vector<1x4x256xf32> to vector<4x256xf32>
    %106 = vector.shape_cast %103 : vector<4x256xf32> to vector<1x4x256xf32>
    tpu.vector_store %arg12[%c0_66, %c0_67, %c0_68], %106 {strides = array<i32>} : memref<1x4x256xf32, #tpu.memory_space<vmem>>, vector<1x4x256xf32>,
    return
  }
  func.func @transform_0(%arg0: i32) -> (i32, i32, i32) {
    %c0_i32 = arith.constant 0 : i32
    %c0_i32_0 = arith.constant 0 : i32
    %c0_i32_1 = arith.constant 0 : i32
    return %arg0, %c0_i32, %c0_i32_0 : i32, i32, i32
  }
  func.func @transform_1(%arg0: i32) -> (i32, i32, i32) {
    %c0_i32 = arith.constant 0 : i32
    %c0_i32_0 = arith.constant 0 : i32
    %c0_i32_1 = arith.constant 0 : i32
    return %arg0, %c0_i32, %c0_i32_0 : i32, i32, i32
  }
  func.func @transform_2(%arg0: i32) -> (i32, i32) {
    %c0_i32 = arith.constant 0 : i32
    %c0_i32_0 = arith.constant 0 : i32
    %c0_i32_1 = arith.constant 0 : i32
    return %c0_i32, %c0_i32_0 : i32, i32
  }
  func.func @transform_3(%arg0: i32) -> (i32, i32, i32) {
    %c0_i32 = arith.constant 0 : i32
    %c0_i32_0 = arith.constant 0 : i32
    %c0_i32_1 = arith.constant 0 : i32
    %c0_i32_2 = arith.constant 0 : i32
    return %c0_i32, %c0_i32_0, %c0_i32_1 : i32, i32, i32
  }
  func.func @transform_4(%arg0: i32) -> (i32, i32) {
    %c0_i32 = arith.constant 0 : i32
    %c0_i32_0 = arith.constant 0 : i32
    %c0_i32_1 = arith.constant 0 : i32
    return %c0_i32, %c0_i32_0 : i32, i32
  }
  func.func @transform_5(%arg0: i32) -> (i32, i32, i32) {
    %c0_i32 = arith.constant 0 : i32
    %c0_i32_0 = arith.constant 0 : i32
    %c0_i32_1 = arith.constant 0 : i32
    %c0_i32_2 = arith.constant 0 : i32
    return %c0_i32, %c0_i32_0, %c0_i32_1 : i32, i32, i32
  }
  func.func @transform_6(%arg0: i32) -> (i32, i32) {
    %c0_i32 = arith.constant 0 : i32
    %c0_i32_0 = arith.constant 0 : i32
    %c0_i32_1 = arith.constant 0 : i32
    return %c0_i32, %c0_i32_0 : i32, i32
  }
  func.func @transform_7(%arg0: i32) -> (i32, i32) {
    %c0_i32 = arith.constant 0 : i32
    %c0_i32_0 = arith.constant 0 : i32
    %c0_i32_1 = arith.constant 0 : i32
    return %c0_i32, %c0_i32_0 : i32, i32
  }
  func.func @transform_8(%arg0: i32) -> (i32, i32) {
    %c0_i32 = arith.constant 0 : i32
    %c0_i32_0 = arith.constant 0 : i32
    %c0_i32_1 = arith.constant 0 : i32
    return %c0_i32, %c0_i32_0 : i32, i32
  }
  func.func @transform_9(%arg0: i32) -> (i32, i32) {
    %c0_i32 = arith.constant 0 : i32
    %c0_i32_0 = arith.constant 0 : i32
    %c0_i32_1 = arith.constant 0 : i32
    return %c0_i32, %c0_i32_0 : i32, i32
  }
  func.func @transform_10(%arg0: i32) -> (i32, i32, i32) {
    %c0_i32 = arith.constant 0 : i32
    %c0_i32_0 = arith.constant 0 : i32
    %c0_i32_1 = arith.constant 0 : i32
    return %arg0, %c0_i32, %c0_i32_0 : i32, i32, i32
  }
  func.func @transform_11(%arg0: i32) -> (i32, i32, i32) {
    %c0_i32 = arith.constant 0 : i32
    %c0_i32_0 = arith.constant 0 : i32
    %c0_i32_1 = arith.constant 0 : i32
    return %arg0, %c0_i32, %c0_i32_0 : i32, i32, i32
  }
}

</mosaic_0001>

<llo_original>
// kernel: gated_masked_conv2d.1
$region0: #{gated_masked_conv2d.1}
  #allocation0 [shape = 'u32[]', space=smem, size = 0x4, offset = 0x4, fixed_abs, tag = 'smem constant byte address 0x4 - core index']
  #allocation1 [shape = 'u32[72,128]{1,0:T(1,128)}', space=vmem, size = 0x9000, scoped, tag = 'internal scratch']
  %s0 = inlined_call_operand.vmem [shape: f32[2,4,289], index: 0, kind: input, shape index: {}]
  %s1 = inlined_call_operand.vmem [shape: f32[2,4,257], index: 1, kind: input, shape index: {}]
  %s2 = inlined_call_operand.vmem [shape: f32[2,256], index: 2, kind: input, shape index: {}]
  %s3 = inlined_call_operand.vmem [shape: f32[6,8,4], index: 3, kind: input, shape index: {}]
  %s4 = inlined_call_operand.vmem [shape: f32[8,1], index: 4, kind: input, shape index: {}]
  %s5 = inlined_call_operand.vmem [shape: f32[2,8,4], index: 5, kind: input, shape index: {}]
  %s6 = inlined_call_operand.vmem [shape: f32[8,1], index: 6, kind: input, shape index: {}]
  %s7 = inlined_call_operand.vmem [shape: f32[8,8], index: 7, kind: input, shape index: {}]
  %s8 = inlined_call_operand.vmem [shape: f32[4,4], index: 8, kind: input, shape index: {}]
  %s9 = inlined_call_operand.vmem [shape: f32[4,1], index: 9, kind: input, shape index: {}]
  %s10 = inlined_call_operand.vmem [shape: f32[2,4,256], index: 10, kind: output, shape index: {0}]
  %s11 = inlined_call_operand.vmem [shape: f32[2,4,256], index: 11, kind: output, shape index: {1}]
  %12 = xla_tuple %s10, %s11
  %s13 = sld [smem:[#allocation0]]
  $region81: #{gated_masked_conv2d.1} parent=0
    _
  %s15 = ssub.s32 1, %s13
  %s16 = scalar_select 0, %s15, %s13
  loop: start=0, step=1, limit=4
  $region2: #{gated_masked_conv2d.1} parent=0 // loop_pre_header
    _
  $region3: #{gated_masked_conv2d.1} parent=0 // loop_header
    %s18 = sphi 0, %s22
    %p19 = scmp.ge.s32.totalorder %s18, 4
    %s28 = sphi 0, %s30
    %s31 = sphi 0, %s28
    %s32 = sphi 0, %s31
    %s48 = sphi 0, %s32
    %s54 = sphi 0, %s56
    %s57 = sphi 0, %s54
    %s58 = sphi 0, %s57
    %s74 = sphi 0, %s58
    %s78 = sphi 0, %s78
    %s80 = sphi 0, %s78
    %s81 = sphi 0, %s80
    %s95 = sphi 0, %s81
    %s99 = sphi 0, %s99
    %s101 = sphi 0, %s99
    %s102 = sphi 0, %s101
    %s116 = sphi 0, %s102
    %s120 = sphi 0, %s120
    %s122 = sphi 0, %s120
    %s123 = sphi 0, %s122
    %s137 = sphi 0, %s123
    %s141 = sphi 0, %s141
    %s143 = sphi 0, %s141
    %s144 = sphi 0, %s143
    %s158 = sphi 0, %s144
    %s162 = sphi 0, %s162
    %s164 = sphi 0, %s162
    %s165 = sphi 0, %s164
    %s179 = sphi 0, %s165
    %s183 = sphi 0, %s183
    %s185 = sphi 0, %s183
    %s186 = sphi 0, %s185
    %s200 = sphi 0, %s186
    %s204 = sphi 0, %s204
    %s206 = sphi 0, %s204
    %s207 = sphi 0, %s206
    %s221 = sphi 0, %s207
    %s225 = sphi 0, %s225
    %s227 = sphi 0, %s225
    %s228 = sphi 0, %s227
    %s242 = sphi 0, %s228
    %s248 = sphi 0, %s250
    %s251 = sphi 0, %s248
    %s252 = sphi 0, %s251
    %s268 = sphi 0, %s252
    %s274 = sphi 0, %s276
    %s277 = sphi 0, %s274
    %s278 = sphi 0, %s277
    %s294 = sphi 0, %s278
  $region4: #{gated_masked_conv2d.1} parent=0 // loop_header_branch
    %21 = sbr.rel (%p19) target = $region8
  $region5: #{gated_masked_conv2d.1} parent=0 // loop_body
    %s23 = ssub.s32 %s18, 1
    %s24 = ssub.s32 %s18, 2
    %s25 = sadd.s32 %s18, 1
    %s26 = ssub.s32 %s18, %s25
    %p27 = scmp.eq.s32.totalorder %s26, 0
    %s29 = sadd.s32 %s28, 1
    %s30 = scalar_select %p27, %s28, %s29
    %p33 = pneg %p27
    %p34 = scmp.eq.s32.totalorder %s18, 1
    %p35 = por %p33, %p34
    %p36 = scmp.ne.s32.totalorder %s28, %s31
    %p37 = scmp.eq.s32.totalorder %s18, 0
    %p38 = por %p36, %p37
    %p39 = scmp.ne.s32.totalorder %s28, %s31
    %p40 = scmp.eq.s32.totalorder %s23, 1
    %p41 = por %p39, %p40
    %p42 = scmp.ne.s32.totalorder %s31, %s32
    %p43 = scmp.eq.s32.totalorder %s23, 0
    %p44 = por %p42, %p43
    %p45 = scmp.ne.s32.totalorder %s31, %s32
    %p46 = scmp.eq.s32.totalorder %s24, 1
    %p47 = por %p45, %p46
    %p49 = scmp.ne.s32.totalorder %s32, %s48
    %p50 = scmp.eq.s32.totalorder %s24, 0
    %p51 = por %p49, %p50
    %s52 = ssub.s32 %s18, %s25
    %p53 = scmp.eq.s32.totalorder %s52, 0
    %s55 = sadd.s32 %s54, 1
    %s56 = scalar_select %p53, %s54, %s55
    %p59 = pneg %p53
    %p60 = scmp.eq.s32.totalorder %s18, 1
    %p61 = por %p59, %p60
    %p62 = scmp.ne.s32.totalorder %s54, %s57
    %p63 = scmp.eq.s32.totalorder %s18, 0
    %p64 = por %p62, %p63
    %p65 = scmp.ne.s32.totalorder %s54, %s57
    %p66 = scmp.eq.s32.totalorder %s23, 1
    %p67 = por %p65, %p66
    %p68 = scmp.ne.s32.totalorder %s57, %s58
    %p69 = scmp.eq.s32.totalorder %s23, 0
    %p70 = por %p68, %p69
    %p71 = scmp.ne.s32.totalorder %s57, %s58
    %p72 = scmp.eq.s32.totalorder %s24, 1
    %p73 = por %p71, %p72
    %p75 = scmp.ne.s32.totalorder %s58, %s74
    %p76 = scmp.eq.s32.totalorder %s24, 0
    %p77 = por %p75, %p76
    %s79 = sadd.s32 %s78, 1
    %p82 = scmp.eq.s32.totalorder %s18, 1
    %p83 = scmp.ne.s32.totalorder %s78, %s80
    %p84 = scmp.eq.s32.totalorder %s18, 0
    %p85 = por %p83, %p84
    %p86 = scmp.ne.s32.totalorder %s78, %s80
    %p87 = scmp.eq.s32.totalorder %s23, 1
    %p88 = por %p86, %p87
    %p89 = scmp.ne.s32.totalorder %s80, %s81
    %p90 = scmp.eq.s32.totalorder %s23, 0
    %p91 = por %p89, %p90
    %p92 = scmp.ne.s32.totalorder %s80, %s81
    %p93 = scmp.eq.s32.totalorder %s24, 1
    %p94 = por %p92, %p93
    %p96 = scmp.ne.s32.totalorder %s81, %s95
    %p97 = scmp.eq.s32.totalorder %s24, 0
    %p98 = por %p96, %p97
    %s100 = sadd.s32 %s99, 1
    %p103 = scmp.eq.s32.totalorder %s18, 1
    %p104 = scmp.ne.s32.totalorder %s99, %s101
    %p105 = scmp.eq.s32.totalorder %s18, 0
    %p106 = por %p104, %p105
    %p107 = scmp.ne.s32.totalorder %s99, %s101
    %p108 = scmp.eq.s32.totalorder %s23, 1
    %p109 = por %p107, %p108
    %p110 = scmp.ne.s32.totalorder %s101, %s102
    %p111 = scmp.eq.s32.totalorder %s23, 0
    %p112 = por %p110, %p111
    %p113 = scmp.ne.s32.totalorder %s101, %s102
    %p114 = scmp.eq.s32.totalorder %s24, 1
    %p115 = por %p113, %p114
    %p117 = scmp.ne.s32.totalorder %s102, %s116
    %p118 = scmp.eq.s32.totalorder %s24, 0
    %p119 = por %p117, %p118
    %s121 = sadd.s32 %s120, 1
    %p124 = scmp.eq.s32.totalorder %s18, 1
    %p125 = scmp.ne.s32.totalorder %s120, %s122
    %p126 = scmp.eq.s32.totalorder %s18, 0
    %p127 = por %p125, %p126
    %p128 = scmp.ne.s32.totalorder %s120, %s122
    %p129 = scmp.eq.s32.totalorder %s23, 1
    %p130 = por %p128, %p129
    %p131 = scmp.ne.s32.totalorder %s122, %s123
    %p132 = scmp.eq.s32.totalorder %s23, 0
    %p133 = por %p131, %p132
    %p134 = scmp.ne.s32.totalorder %s122, %s123
    %p135 = scmp.eq.s32.totalorder %s24, 1
    %p136 = por %p134, %p135
    %p138 = scmp.ne.s32.totalorder %s123, %s137
    %p139 = scmp.eq.s32.totalorder %s24, 0
    %p140 = por %p138, %p139
    %s142 = sadd.s32 %s141, 1
    %p145 = scmp.eq.s32.totalorder %s18, 1
    %p146 = scmp.ne.s32.totalorder %s141, %s143
    %p147 = scmp.eq.s32.totalorder %s18, 0
    %p148 = por %p146, %p147
    %p149 = scmp.ne.s32.totalorder %s141, %s143
    %p150 = scmp.eq.s32.totalorder %s23, 1
    %p151 = por %p149, %p150
    %p152 = scmp.ne.s32.totalorder %s143, %s144
    %p153 = scmp.eq.s32.totalorder %s23, 0
    %p154 = por %p152, %p153
    %p155 = scmp.ne.s32.totalorder %s143, %s144
    %p156 = scmp.eq.s32.totalorder %s24, 1
    %p157 = por %p155, %p156
    %p159 = scmp.ne.s32.totalorder %s144, %s158
    %p160 = scmp.eq.s32.totalorder %s24, 0
    %p161 = por %p159, %p160
    %s163 = sadd.s32 %s162, 1
    %p166 = scmp.eq.s32.totalorder %s18, 1
    %p167 = scmp.ne.s32.totalorder %s162, %s164
    %p168 = scmp.eq.s32.totalorder %s18, 0
    %p169 = por %p167, %p168
    %p170 = scmp.ne.s32.totalorder %s162, %s164
    %p171 = scmp.eq.s32.totalorder %s23, 1
    %p172 = por %p170, %p171
    %p173 = scmp.ne.s32.totalorder %s164, %s165
    %p174 = scmp.eq.s32.totalorder %s23, 0
    %p175 = por %p173, %p174
    %p176 = scmp.ne.s32.totalorder %s164, %s165
    %p177 = scmp.eq.s32.totalorder %s24, 1
    %p178 = por %p176, %p177
    %p180 = scmp.ne.s32.totalorder %s165, %s179
    %p181 = scmp.eq.s32.totalorder %s24, 0
    %p182 = por %p180, %p181
    %s184 = sadd.s32 %s183, 1
    %p187 = scmp.eq.s32.totalorder %s18, 1
    %p188 = scmp.ne.s32.totalorder %s183, %s185
    %p189 = scmp.eq.s32.totalorder %s18, 0
    %p190 = por %p188, %p189
    %p191 = scmp.ne.s32.totalorder %s183, %s185
    %p192 = scmp.eq.s32.totalorder %s23, 1
    %p193 = por %p191, %p192
    %p194 = scmp.ne.s32.totalorder %s185, %s186
    %p195 = scmp.eq.s32.totalorder %s23, 0
    %p196 = por %p194, %p195
    %p197 = scmp.ne.s32.totalorder %s185, %s186
    %p198 = scmp.eq.s32.totalorder %s24, 1
    %p199 = por %p197, %p198
    %p201 = scmp.ne.s32.totalorder %s186, %s200
    %p202 = scmp.eq.s32.totalorder %s24, 0
    %p203 = por %p201, %p202
    %s205 = sadd.s32 %s204, 1
    %p208 = scmp.eq.s32.totalorder %s18, 1
    %p209 = scmp.ne.s32.totalorder %s204, %s206
    %p210 = scmp.eq.s32.totalorder %s18, 0
    %p211 = por %p209, %p210
    %p212 = scmp.ne.s32.totalorder %s204, %s206
    %p213 = scmp.eq.s32.totalorder %s23, 1
    %p214 = por %p212, %p213
    %p215 = scmp.ne.s32.totalorder %s206, %s207
    %p216 = scmp.eq.s32.totalorder %s23, 0
    %p217 = por %p215, %p216
    %p218 = scmp.ne.s32.totalorder %s206, %s207
    %p219 = scmp.eq.s32.totalorder %s24, 1
    %p220 = por %p218, %p219
    %p222 = scmp.ne.s32.totalorder %s207, %s221
    %p223 = scmp.eq.s32.totalorder %s24, 0
    %p224 = por %p222, %p223
    %s226 = sadd.s32 %s225, 1
    %p229 = scmp.eq.s32.totalorder %s18, 1
    %p230 = scmp.ne.s32.totalorder %s225, %s227
    %p231 = scmp.eq.s32.totalorder %s18, 0
    %p232 = por %p230, %p231
    %p233 = scmp.ne.s32.totalorder %s225, %s227
    %p234 = scmp.eq.s32.totalorder %s23, 1
    %p235 = por %p233, %p234
    %p236 = scmp.ne.s32.totalorder %s227, %s228
    %p237 = scmp.eq.s32.totalorder %s23, 0
    %p238 = por %p236, %p237
    %p239 = scmp.ne.s32.totalorder %s227, %s228
    %p240 = scmp.eq.s32.totalorder %s24, 1
    %p241 = por %p239, %p240
    %p243 = scmp.ne.s32.totalorder %s228, %s242
    %p244 = scmp.eq.s32.totalorder %s24, 0
    %p245 = por %p243, %p244
    %s246 = ssub.s32 %s18, %s25
    %p247 = scmp.eq.s32.totalorder %s246, 0
    %s249 = sadd.s32 %s248, 1
    %s250 = scalar_select %p247, %s248, %s249
    %p253 = pneg %p247
    %p254 = scmp.eq.s32.totalorder %s18, 1
    %p255 = por %p253, %p254
    %p256 = scmp.ne.s32.totalorder %s248, %s251
    %p257 = scmp.eq.s32.totalorder %s18, 0
    %p258 = por %p256, %p257
    %p259 = scmp.ne.s32.totalorder %s248, %s251
    %p260 = scmp.eq.s32.totalorder %s23, 1
    %p261 = por %p259, %p260
    %p262 = scmp.ne.s32.totalorder %s251, %s252
    %p263 = scmp.eq.s32.totalorder %s23, 0
    %p264 = por %p262, %p263
    %p265 = scmp.ne.s32.totalorder %s251, %s252
    %p266 = scmp.eq.s32.totalorder %s24, 1
    %p267 = por %p265, %p266
    %p269 = scmp.ne.s32.totalorder %s252, %s268
    %p270 = scmp.eq.s32.totalorder %s24, 0
    %p271 = por %p269, %p270
    %s272 = ssub.s32 %s18, %s25
    %p273 = scmp.eq.s32.totalorder %s272, 0
    %s275 = sadd.s32 %s274, 1
    %s276 = scalar_select %p273, %s274, %s275
    %p279 = pneg %p273
    %p280 = scmp.eq.s32.totalorder %s18, 1
    %p281 = por %p279, %p280
    %p282 = scmp.ne.s32.totalorder %s274, %s277
    %p283 = scmp.eq.s32.totalorder %s18, 0
    %p284 = por %p282, %p283
    %p285 = scmp.ne.s32.totalorder %s274, %s277
    %p286 = scmp.eq.s32.totalorder %s23, 1
    %p287 = por %p285, %p286
    %p288 = scmp.ne.s32.totalorder %s277, %s278
    %p289 = scmp.eq.s32.totalorder %s23, 0
    %p290 = por %p288, %p289
    %p291 = scmp.ne.s32.totalorder %s277, %s278
    %p292 = scmp.eq.s32.totalorder %s24, 1
    %p293 = por %p291, %p292
    %p295 = scmp.ne.s32.totalorder %s278, %s294
    %p296 = scmp.eq.s32.totalorder %s24, 0
    %p297 = por %p295, %p296
    %p298 = scmp.le.s32.totalorder 1, %s18
    %p299 = scmp.lt.s32.totalorder %s18, 3
    %p300 = pnand %p298, %p299
    %p301 = pneg %p300
    // Predicated region
    $region9: #{gated_masked_conv2d.1} parent=5 // pred_check
      _
    $region10: #{gated_masked_conv2d.1} parent=5 // pred_check_branch
      %303 = sbr.rel (%p300) target = $region12
    $region11: #{gated_masked_conv2d.1} parent=5 // pred_region
      %s304 = ssub.s32 %s18, 1
      // Predicated region
      $region13: #{gated_masked_conv2d.1} parent=11 // pred_check
        %p305 = pneg %p91
      $region14: #{gated_masked_conv2d.1} parent=11 // pred_check_branch
        %307 = sbr.rel (%p305) target = $region16
      $region15: #{gated_masked_conv2d.1} parent=11 // pred_region
        _
      $region16: #{gated_masked_conv2d.1} parent=11 // pred_fallthru
        _
      // Predicated region
      $region17: #{gated_masked_conv2d.1} parent=11 // pred_check
        %p308 = pneg %p112
      $region18: #{gated_masked_conv2d.1} parent=11 // pred_check_branch
        %310 = sbr.rel (%p308) target = $region20
      $region19: #{gated_masked_conv2d.1} parent=11 // pred_region
        _
      $region20: #{gated_masked_conv2d.1} parent=11 // pred_fallthru
        _
      // Predicated region
      $region21: #{gated_masked_conv2d.1} parent=11 // pred_check
        %p311 = pneg %p133
      $region22: #{gated_masked_conv2d.1} parent=11 // pred_check_branch
        %313 = sbr.rel (%p311) target = $region24
      $region23: #{gated_masked_conv2d.1} parent=11 // pred_region
        _
      $region24: #{gated_masked_conv2d.1} parent=11 // pred_fallthru
        _
      // Predicated region
      $region25: #{gated_masked_conv2d.1} parent=11 // pred_check
        %p314 = pneg %p154
      $region26: #{gated_masked_conv2d.1} parent=11 // pred_check_branch
        %316 = sbr.rel (%p314) target = $region28
      $region27: #{gated_masked_conv2d.1} parent=11 // pred_region
        _
      $region28: #{gated_masked_conv2d.1} parent=11 // pred_fallthru
        _
      // Predicated region
      $region29: #{gated_masked_conv2d.1} parent=11 // pred_check
        %p317 = pneg %p175
      $region30: #{gated_masked_conv2d.1} parent=11 // pred_check_branch
        %319 = sbr.rel (%p317) target = $region32
      $region31: #{gated_masked_conv2d.1} parent=11 // pred_region
        _
      $region32: #{gated_masked_conv2d.1} parent=11 // pred_fallthru
        _
      // Predicated region
      $region33: #{gated_masked_conv2d.1} parent=11 // pred_check
        %p320 = pneg %p196
      $region34: #{gated_masked_conv2d.1} parent=11 // pred_check_branch
        %322 = sbr.rel (%p320) target = $region36
      $region35: #{gated_masked_conv2d.1} parent=11 // pred_region
        _
      $region36: #{gated_masked_conv2d.1} parent=11 // pred_fallthru
        _
      // Predicated region
      $region37: #{gated_masked_conv2d.1} parent=11 // pred_check
        %p323 = pneg %p217
      $region38: #{gated_masked_conv2d.1} parent=11 // pred_check_branch
        %325 = sbr.rel (%p323) target = $region40
      $region39: #{gated_masked_conv2d.1} parent=11 // pred_region
        _
      $region40: #{gated_masked_conv2d.1} parent=11 // pred_fallthru
        _
      // Predicated region
      $region41: #{gated_masked_conv2d.1} parent=11 // pred_check
        %p326 = pneg %p238
      $region42: #{gated_masked_conv2d.1} parent=11 // pred_check_branch
        %328 = sbr.rel (%p326) target = $region44
      $region43: #{gated_masked_conv2d.1} parent=11 // pred_region
        _
      $region44: #{gated_masked_conv2d.1} parent=11 // pred_fallthru
        _
    $region12: #{gated_masked_conv2d.1} parent=5 // pred_fallthru
      _
    %p329 = scmp.lt.s32.totalorder %s18, 2
    // Predicated region
    $region45: #{gated_masked_conv2d.1} parent=5 // pred_check
      %p330 = pneg %p329
    $region46: #{gated_masked_conv2d.1} parent=5 // pred_check_branch
      %332 = sbr.rel (%p330) target = $region48
    $region47: #{gated_masked_conv2d.1} parent=5 // pred_region
      // Predicated region
      $region49: #{gated_masked_conv2d.1} parent=47 // pred_check
        %p333 = pneg %p38
      $region50: #{gated_masked_conv2d.1} parent=47 // pred_check_branch
        %335 = sbr.rel (%p333) target = $region52
      $region51: #{gated_masked_conv2d.1} parent=47 // pred_region
        %p336 = scmp.lt.s32.totalorder %s18, 1
        %s337 = scalar_select %p336, %s18, 1
        %s338 = smul.addr %s337, 3
        %s339 = smul.addr %s338, 4
        %s340 = scalar_lea.vmem %s0, %s339
      $region52: #{gated_masked_conv2d.1} parent=47 // pred_fallthru
        _
      // Predicated region
      $region53: #{gated_masked_conv2d.1} parent=47 // pred_check
        %p341 = pneg %p64
      $region54: #{gated_masked_conv2d.1} parent=47 // pred_check_branch
        %343 = sbr.rel (%p341) target = $region56
      $region55: #{gated_masked_conv2d.1} parent=47 // pred_region
        %p344 = scmp.lt.s32.totalorder %s18, 1
        %s345 = scalar_select %p344, %s18, 1
        %s346 = smul.addr %s345, 3
        %s347 = smul.addr %s346, 4
        %s348 = scalar_lea.vmem %s1, %s347
      $region56: #{gated_masked_conv2d.1} parent=47 // pred_fallthru
        _
    $region48: #{gated_masked_conv2d.1} parent=5 // pred_fallthru
      _
    %p349 = scmp.le.s32.totalorder 1, %s18
    %p350 = scmp.lt.s32.totalorder %s18, 3
    %p351 = pnand %p349, %p350
    %p352 = pneg %p351
    // Predicated region
    $region57: #{gated_masked_conv2d.1} parent=5 // pred_check
      _
    $region58: #{gated_masked_conv2d.1} parent=5 // pred_check_branch
      %354 = sbr.rel (%p351) target = $region60
    $region59: #{gated_masked_conv2d.1} parent=5 // pred_region
      %s355 = ssub.s32 %s18, 1
      %p356 = scmp.lt.s32.totalorder %s23, 1
      %s357 = scalar_select %p356, %s23, 1
      %s358 = smul.addr %s357, 3
      %s359 = smul.addr %s358, 4
      %s360 = scalar_lea.vmem %s0, %s359
      %p361 = pneg %p44
      %p362 = pneg %p41
      %p363 = scmp.lt.s32.totalorder %s23, 1
      %s364 = scalar_select %p363, %s23, 1
      %s365 = smul.addr %s364, 3
      %s366 = smul.addr %s365, 4
      %s367 = scalar_lea.vmem %s1, %s366
      %p368 = pneg %p70
      %p369 = pneg %p67
      %p370 = pneg %p91
      %p371 = pneg %p88
      %p372 = pneg %p112
      %p373 = pneg %p109
      %p374 = pneg %p133
      %p375 = pneg %p130
      %p376 = pneg %p154
      %p377 = pneg %p151
      %p378 = pneg %p175
      %p379 = pneg %p172
      %p380 = pneg %p196
      %p381 = pneg %p193
      %p382 = pneg %p217
      %p383 = pneg %p214
      %p384 = pneg %p238
      %p385 = pneg %p235
      %p386 = pneg %p264
      %p387 = pneg %p261
      %p388 = scmp.lt.s32.totalorder %s23, 1
      %s389 = scalar_select %p388, %s23, 1
      %s390 = smul.addr %s389, 2
      %s391 = smul.addr %s390, 4
      %s392 = scalar_lea.vmem %s10, %s391
      %p393 = pneg %p290
      %p394 = pneg %p287
      %p395 = scmp.lt.s32.totalorder %s23, 1
      %s396 = scalar_select %p395, %s23, 1
      %s397 = smul.addr %s396, 2
      %s398 = smul.addr %s397, 4
      %s399 = scalar_lea.vmem %s11, %s398
      %p400 = scmp.lt.s32.totalorder %s23, 1
      %s401 = scalar_select %p400, %s23, 1
      %s402 = smul.addr %s401, 3
      %s403 = smul.addr %s402, 4
      %s404 = scalar_lea.vmem %s0, %s403
      %p405 = scmp.lt.s32.totalorder %s23, 1
      %s406 = scalar_select %p405, %s23, 1
      %s407 = smul.addr %s406, 3
      %s408 = smul.addr %s407, 4
      %s409 = scalar_lea.vmem %s1, %s408
      %p410 = scmp.lt.s32.totalorder %s23, 1
      %s411 = scalar_select %p410, %s23, 1
      %s412 = smul.addr %s411, 2
      %s413 = smul.addr %s412, 4
      %s414 = scalar_lea.vmem %s10, %s413
      %p415 = scmp.lt.s32.totalorder %s23, 1
      %s416 = scalar_select %p415, %s23, 1
      %s417 = smul.addr %s416, 2
      %s418 = smul.addr %s417, 4
      %s419 = scalar_lea.vmem %s11, %s418
      %v420 = vld [vmem:[%s2] sm:$0xf]
      %v421 = vld [vmem:[%s404] sm:$0xff]
      %v423 = vperm.slane %v420, 0
      %v424 = vperm.slane %v420, 2
      %v427 = vperm.slane %v423, 0
      %v428 = vperm.slane %v424, 0
      %v431 = vrot.slane %v428, 4
      %vm432 = vcmask 1043456
      %v433 = vsel %vm432, %v427, %v431
      %v435 = vmul.f32 %v421, %v433
      %v436 = vld [vmem:[%s3] sm:$0xff]
      %v437 = vld [vmem:[%s404 + $0x8] sm:$0xf]
      %s438 = scalar_lea.vmem %s3, 8
      %v439 = vld [vmem:[%s438] sm:$0xff]
      %442 = vst [vmem:[#allocation1] ss:$2 sm:$0xff] %v421
      %s443 = scalar_lea.vmem [#allocation1], 16
      %444 = vst [vmem:[%s443] ss:$2 sm:$0xff] %v437
      %v445 = vld.sshfl [vmem:[#allocation1] sm:$0xff pattern:$0x75316420]
      %v446 = vld.sshfl [vmem:[#allocation1 + $0x8] sm:$0xff pattern:$0x75316420]
      %v447 = vld.sshfl [vmem:[#allocation1 + $0x10] sm:$0xff pattern:$0x75316420]
      %448 = vrot.lane.b32.xlu0 %v445, 127
      %v449 = vpop.permute.xlu0 %448
      %450 = vrot.lane.b32.xlu0 %v446, 127
      %v451 = vpop.permute.xlu0 %450
      %452 = vrot.lane.b32.xlu0 %v447, 127
      %v453 = vpop.permute.xlu0 %452
      %vm454 = vcmask 1039360
      %v455 = vsel %vm454, %v449, %v451
      %v456 = vsel %vm454, %v451, %v453
      %vm457 = vcmask 31744
      %v459 = vsel %vm457, %v439, 0
      %v461 = vsel %vm432, %v455, 0
      %v463 = vsel %vm432, %v456, 0
      %465 = vmatpush.msra.mxu0 0.0
      %466 = vmatpush.msra.mxu0 0.0
      %467 = vmatpush.msra.mxu0 0.0
      %468 = vmatpush.msra.mxu0 0.0
      %469 = vmatpush.msra.mxu0 0.0
      %470 = vmatpush.msra.mxu0 0.0
      %471 = vmatpush.msra.mxu0 0.0
      %472 = vmatpush.msra.mxu0 0.0
      %473 = vmatpush.msra.mxu0 0.0
      %474 = vmatpush.msra.mxu0 0.0
      %475 = vmatpush.msra.mxu0 0.0
      %476 = vmatpush.msra.mxu0 0.0
      %477 = vmatpush.msra.mxu0 0.0
      %478 = vmatpush.msra.mxu0 0.0
      %479 = vmatpush.msra.mxu0 0.0
      %480 = vmatpush.msra.mxu0 %v461
      %481 = vmatmul.f32.gmra.mxu0 %v459
      %v482 = vpop.f32.mrf.mxu0
      %v483 = vadd.f32 0.0, %v482
      %484 = vdwg.mxu0
      %485 = vmatpush.msra.mxu0 0.0
      %486 = vmatpush.msra.mxu0 0.0
      %487 = vmatpush.msra.mxu0 0.0
      %488 = vmatpush.msra.mxu0 0.0
      %489 = vmatpush.msra.mxu0 0.0
      %490 = vmatpush.msra.mxu0 0.0
      %491 = vmatpush.msra.mxu0 0.0
      %492 = vmatpush.msra.mxu0 0.0
      %493 = vmatpush.msra.mxu0 0.0
      %494 = vmatpush.msra.mxu0 0.0
      %495 = vmatpush.msra.mxu0 0.0
      %496 = vmatpush.msra.mxu0 0.0
      %497 = vmatpush.msra.mxu0 0.0
      %498 = vmatpush.msra.mxu0 0.0
      %499 = vmatpush.msra.mxu0 0.0
      %500 = vmatpush.msra.mxu0 %v463
      %501 = vmatmul.f32.gmra.mxu0 %v459
      %v502 = vpop.f32.mrf.mxu0
      %v503 = vadd.f32 0.0, %v502
      %504 = vdwg.mxu0
      %506 = vst [vmem:[#allocation1] ss:$2 sm:$0xff] %v435
      %v507 = vld.sshfl [vmem:[#allocation1] sm:$0xff pattern:$0x75316420]
      %v508 = vld.sshfl [vmem:[#allocation1 + $0x8] sm:$0xff pattern:$0x75316420]
      %v510 = vsel %vm457, %v436, 0
      %v512 = vsel %vm432, %v507, 0
      %v514 = vsel %vm432, %v508, 0
      %516 = vmatpush.msra.mxu0 0.0
      %517 = vmatpush.msra.mxu0 0.0
      %518 = vmatpush.msra.mxu0 0.0
      %519 = vmatpush.msra.mxu0 0.0
      %520 = vmatpush.msra.mxu0 0.0
      %521 = vmatpush.msra.mxu0 0.0
      %522 = vmatpush.msra.mxu0 0.0
      %523 = vmatpush.msra.mxu0 0.0
      %524 = vmatpush.msra.mxu0 0.0
      %525 = vmatpush.msra.mxu0 0.0
      %526 = vmatpush.msra.mxu0 0.0
      %527 = vmatpush.msra.mxu0 0.0
      %528 = vmatpush.msra.mxu0 0.0
      %529 = vmatpush.msra.mxu0 0.0
      %530 = vmatpush.msra.mxu0 0.0
      %531 = vmatpush.msra.mxu0 %v512
      %532 = vmatmul.f32.gmra.mxu0 %v510
      %v533 = vpop.f32.mrf.mxu0
      %v534 = vadd.f32 %v483, %v533
      %535 = vdwg.mxu0
      %536 = vmatpush.msra.mxu0 0.0
      %537 = vmatpush.msra.mxu0 0.0
      %538 = vmatpush.msra.mxu0 0.0
      %539 = vmatpush.msra.mxu0 0.0
      %540 = vmatpush.msra.mxu0 0.0
      %541 = vmatpush.msra.mxu0 0.0
      %542 = vmatpush.msra.mxu0 0.0
      %543 = vmatpush.msra.mxu0 0.0
      %544 = vmatpush.msra.mxu0 0.0
      %545 = vmatpush.msra.mxu0 0.0
      %546 = vmatpush.msra.mxu0 0.0
      %547 = vmatpush.msra.mxu0 0.0
      %548 = vmatpush.msra.mxu0 0.0
      %549 = vmatpush.msra.mxu0 0.0
      %550 = vmatpush.msra.mxu0 0.0
      %551 = vmatpush.msra.mxu0 %v514
      %552 = vmatmul.f32.gmra.mxu0 %v510
      %v553 = vpop.f32.mrf.mxu0
      %v554 = vadd.f32 %v503, %v553
      %555 = vdwg.mxu0
      %v556 = vld [vmem:[%s404] sm:$0xff]
      %v557 = vld [vmem:[%s404 + $0x8] sm:$0xf]
      %v558 = vperm.slane %v420, 1
      %v559 = vperm.slane %v420, 3
      %v562 = vperm.slane %v558, 1
      %v563 = vperm.slane %v559, 1
      %v566 = vrot.slane %v563, 4
      %v567 = vsel %vm432, %v562, %v566
      %568 = vrot.lane.b32.xlu0 %v567, 2
      %v569 = vpop.permute.xlu0 %568
      %v570 = vrot.slane %v569, 4
      %vm571 = vcmask 15360
      %v572 = vsel %vm571, %v570, %v569
      %v575 = vmul.f32 %v556, %v572
      %v576 = vmul.f32 %v557, %v570
      %s577 = scalar_lea.vmem %s3, 16
      %v578 = vld [vmem:[%s577] sm:$0xff]
      %581 = vst [vmem:[#allocation1] ss:$2 sm:$0xff] %v575
      %s582 = scalar_lea.vmem [#allocation1], 16
      %583 = vst [vmem:[%s582] ss:$2 sm:$0xff] %v576
      %v584 = vld.sshfl [vmem:[#allocation1] sm:$0xff pattern:$0x75316420]
      %v585 = vld.sshfl [vmem:[#allocation1 + $0x8] sm:$0xff pattern:$0x75316420]
      %v586 = vld.sshfl [vmem:[#allocation1 + $0x10] sm:$0xff pattern:$0x75316420]
      %587 = vrot.lane.b32.xlu0 %v584, 126
      %v588 = vpop.permute.xlu0 %587
      %589 = vrot.lane.b32.xlu0 %v585, 126
      %v590 = vpop.permute.xlu0 %589
      %591 = vrot.lane.b32.xlu0 %v586, 126
      %v592 = vpop.permute.xlu0 %591
      %vm593 = vcmask 1031168
      %v594 = vsel %vm593, %v588, %v590
      %v595 = vsel %vm593, %v590, %v592
      %v597 = vsel %vm457, %v578, 0
      %v599 = vsel %vm432, %v594, 0
      %v601 = vsel %vm432, %v595, 0
      %603 = vmatpush.msra.mxu0 0.0
      %604 = vmatpush.msra.mxu0 0.0
      %605 = vmatpush.msra.mxu0 0.0
      %606 = vmatpush.msra.mxu0 0.0
      %607 = vmatpush.msra.mxu0 0.0
      %608 = vmatpush.msra.mxu0 0.0
      %609 = vmatpush.msra.mxu0 0.0
      %610 = vmatpush.msra.mxu0 0.0
      %611 = vmatpush.msra.mxu0 0.0
      %612 = vmatpush.msra.mxu0 0.0
      %613 = vmatpush.msra.mxu0 0.0
      %614 = vmatpush.msra.mxu0 0.0
      %615 = vmatpush.msra.mxu0 0.0
      %616 = vmatpush.msra.mxu0 0.0
      %617 = vmatpush.msra.mxu0 0.0
      %618 = vmatpush.msra.mxu0 %v599
      %619 = vmatmul.f32.gmra.mxu0 %v597
      %v620 = vpop.f32.mrf.mxu0
      %v621 = vadd.f32 0.0, %v620
      %622 = vdwg.mxu0
      %623 = vmatpush.msra.mxu0 0.0
      %624 = vmatpush.msra.mxu0 0.0
      %625 = vmatpush.msra.mxu0 0.0
      %626 = vmatpush.msra.mxu0 0.0
      %627 = vmatpush.msra.mxu0 0.0
      %628 = vmatpush.msra.mxu0 0.0
      %629 = vmatpush.msra.mxu0 0.0
      %630 = vmatpush.msra.mxu0 0.0
      %631 = vmatpush.msra.mxu0 0.0
      %632 = vmatpush.msra.mxu0 0.0
      %633 = vmatpush.msra.mxu0 0.0
      %634 = vmatpush.msra.mxu0 0.0
      %635 = vmatpush.msra.mxu0 0.0
      %636 = vmatpush.msra.mxu0 0.0
      %637 = vmatpush.msra.mxu0 0.0
      %638 = vmatpush.msra.mxu0 %v601
      %639 = vmatmul.f32.gmra.mxu0 %v597
      %v640 = vpop.f32.mrf.mxu0
      %v641 = vadd.f32 0.0, %v640
      %642 = vdwg.mxu0
      %v643 = vadd.f32 %v534, %v621
      %v644 = vadd.f32 %v554, %v641
      %v645 = vld [vmem:[%s404] sm:$0xff]
      %v646 = vld [vmem:[%s404 + $0x8] sm:$0xf]
      %647 = vrot.lane.b32.xlu0 %v433, 16
      %v648 = vpop.permute.xlu0 %647
      %v649 = vrot.slane %v648, 4
      %vm650 = vcmask 130048
      %v651 = vsel %vm650, %v649, %v648
      %v654 = vmul.f32 %v645, %v651
      %v655 = vmul.f32 %v646, %v649
      %s656 = scalar_lea.vmem %s3, 24
      %v657 = vld [vmem:[%s656] sm:$0xff]
      %660 = vst [vmem:[#allocation1] ss:$2 sm:$0xff] %v654
      %s661 = scalar_lea.vmem [#allocation1], 16
      %662 = vst [vmem:[%s661] ss:$2 sm:$0xff] %v655
      %v663 = vld.sshfl [vmem:[#allocation1] sm:$0xff pattern:$0x75316420]
      %v664 = vld.sshfl [vmem:[#allocation1 + $0x8] sm:$0xff pattern:$0x75316420]
      %v665 = vld.sshfl [vmem:[#allocation1 + $0x10] sm:$0xff pattern:$0x75316420]
      %666 = vrot.lane.b32.xlu0 %v663, 112
      %v667 = vpop.permute.xlu0 %666
      %668 = vrot.lane.b32.xlu0 %v664, 112
      %v669 = vpop.permute.xlu0 %668
      %670 = vrot.lane.b32.xlu0 %v665, 112
      %v671 = vpop.permute.xlu0 %670
      %vm672 = vcmask 916480
      %v673 = vsel %vm672, %v667, %v669
      %v674 = vsel %vm672, %v669, %v671
      %v676 = vsel %vm457, %v657, 0
      %v678 = vsel %vm432, %v673, 0
      %v680 = vsel %vm432, %v674, 0
      %682 = vmatpush.msra.mxu0 0.0
      %683 = vmatpush.msra.mxu0 0.0
      %684 = vmatpush.msra.mxu0 0.0
      %685 = vmatpush.msra.mxu0 0.0
      %686 = vmatpush.msra.mxu0 0.0
      %687 = vmatpush.msra.mxu0 0.0
      %688 = vmatpush.msra.mxu0 0.0
      %689 = vmatpush.msra.mxu0 0.0
      %690 = vmatpush.msra.mxu0 0.0
      %691 = vmatpush.msra.mxu0 0.0
      %692 = vmatpush.msra.mxu0 0.0
      %693 = vmatpush.msra.mxu0 0.0
      %694 = vmatpush.msra.mxu0 0.0
      %695 = vmatpush.msra.mxu0 0.0
      %696 = vmatpush.msra.mxu0 0.0
      %697 = vmatpush.msra.mxu0 %v678
      %698 = vmatmul.f32.gmra.mxu0 %v676
      %v699 = vpop.f32.mrf.mxu0
      %v700 = vadd.f32 0.0, %v699
      %701 = vdwg.mxu0
      %702 = vmatpush.msra.mxu0 0.0
      %703 = vmatpush.msra.mxu0 0.0
      %704 = vmatpush.msra.mxu0 0.0
      %705 = vmatpush.msra.mxu0 0.0
      %706 = vmatpush.msra.mxu0 0.0
      %707 = vmatpush.msra.mxu0 0.0
      %708 = vmatpush.msra.mxu0 0.0
      %709 = vmatpush.msra.mxu0 0.0
      %710 = vmatpush.msra.mxu0 0.0
      %711 = vmatpush.msra.mxu0 0.0
      %712 = vmatpush.msra.mxu0 0.0
      %713 = vmatpush.msra.mxu0 0.0
      %714 = vmatpush.msra.mxu0 0.0
      %715 = vmatpush.msra.mxu0 0.0
      %716 = vmatpush.msra.mxu0 0.0
      %717 = vmatpush.msra.mxu0 %v680
      %718 = vmatmul.f32.gmra.mxu0 %v676
      %v719 = vpop.f32.mrf.mxu0
      %v720 = vadd.f32 0.0, %v719
      %721 = vdwg.mxu0
      %v722 = vadd.f32 %v643, %v700
      %v723 = vadd.f32 %v644, %v720
      %v724 = vld [vmem:[%s404] sm:$0xff]
      %v725 = vld [vmem:[%s404 + $0x8] sm:$0xf]
      %s726 = scalar_lea.vmem %s3, 32
      %v727 = vld [vmem:[%s726] sm:$0xff]
      %730 = vst [vmem:[#allocation1] ss:$2 sm:$0xff] %v724
      %s731 = scalar_lea.vmem [#allocation1], 16
      %732 = vst [vmem:[%s731] ss:$2 sm:$0xff] %v725
      %v733 = vld.sshfl [vmem:[#allocation1] sm:$0xff pattern:$0x75316420]
      %v734 = vld.sshfl [vmem:[#allocation1 + $0x8] sm:$0xff pattern:$0x75316420]
      %v735 = vld.sshfl [vmem:[#allocation1 + $0x10] sm:$0xff pattern:$0x75316420]
      %736 = vrot.lane.b32.xlu0 %v733, 111
      %v737 = vpop.permute.xlu0 %736
      %738 = vrot.lane.b32.xlu0 %v734, 111
      %v739 = vpop.permute.xlu0 %738
      %740 = vrot.lane.b32.xlu0 %v735, 111
      %v741 = vpop.permute.xlu0 %740
      %vm742 = vcmask 908288
      %v743 = vsel %vm742, %v737, %v739
      %v744 = vsel %vm742, %v739, %v741
      %v746 = vsel %vm457, %v727, 0
      %v748 = vsel %vm432, %v743, 0
      %v750 = vsel %vm432, %v744, 0
      %752 = vmatpush.msra.mxu0 0.0
      %753 = vmatpush.msra.mxu0 0.0
      %754 = vmatpush.msra.mxu0 0.0
      %755 = vmatpush.msra.mxu0 0.0
      %756 = vmatpush.msra.mxu0 0.0
      %757 = vmatpush.msra.mxu0 0.0
      %758 = vmatpush.msra.mxu0 0.0
      %759 = vmatpush.msra.mxu0 0.0
      %760 = vmatpush.msra.mxu0 0.0
      %761 = vmatpush.msra.mxu0 0.0
      %762 = vmatpush.msra.mxu0 0.0
      %763 = vmatpush.msra.mxu0 0.0
      %764 = vmatpush.msra.mxu0 0.0
      %765 = vmatpush.msra.mxu0 0.0
      %766 = vmatpush.msra.mxu0 0.0
      %767 = vmatpush.msra.mxu0 %v748
      %768 = vmatmul.f32.gmra.mxu0 %v746
      %v769 = vpop.f32.mrf.mxu0
      %v770 = vadd.f32 0.0, %v769
      %771 = vdwg.mxu0
      %772 = vmatpush.msra.mxu0 0.0
      %773 = vmatpush.msra.mxu0 0.0
      %774 = vmatpush.msra.mxu0 0.0
      %775 = vmatpush.msra.mxu0 0.0
      %776 = vmatpush.msra.mxu0 0.0
      %777 = vmatpush.msra.mxu0 0.0
      %778 = vmatpush.msra.mxu0 0.0
      %779 = vmatpush.msra.mxu0 0.0
      %780 = vmatpush.msra.mxu0 0.0
      %781 = vmatpush.msra.mxu0 0.0
      %782 = vmatpush.msra.mxu0 0.0
      %783 = vmatpush.msra.mxu0 0.0
      %784 = vmatpush.msra.mxu0 0.0
      %785 = vmatpush.msra.mxu0 0.0
      %786 = vmatpush.msra.mxu0 0.0
      %787 = vmatpush.msra.mxu0 %v750
      %788 = vmatmul.f32.gmra.mxu0 %v746
      %v789 = vpop.f32.mrf.mxu0
      %v790 = vadd.f32 0.0, %v789
      %791 = vdwg.mxu0
      %v792 = vadd.f32 %v722, %v770
      %v793 = vadd.f32 %v723, %v790
      %v794 = vld [vmem:[%s404] sm:$0xff]
      %v795 = vld [vmem:[%s404 + $0x8] sm:$0xf]
      %796 = vrot.lane.b32.xlu0 %v567, 18
      %v797 = vpop.permute.xlu0 %796
      %v798 = vrot.slane %v797, 4
      %vm799 = vcmask 146432
      %v800 = vsel %vm799, %v798, %v797
      %v803 = vmul.f32 %v794, %v800
      %v804 = vmul.f32 %v795, %v798
      %s805 = scalar_lea.vmem %s3, 40
      %v806 = vld [vmem:[%s805] sm:$0xff]
      %809 = vst [vmem:[#allocation1] ss:$2 sm:$0xff] %v803
      %s810 = scalar_lea.vmem [#allocation1], 16
      %811 = vst [vmem:[%s810] ss:$2 sm:$0xff] %v804
      %v812 = vld.sshfl [vmem:[#allocation1] sm:$0xff pattern:$0x75316420]
      %v813 = vld.sshfl [vmem:[#allocation1 + $0x8] sm:$0xff pattern:$0x75316420]
      %v814 = vld.sshfl [vmem:[#allocation1 + $0x10] sm:$0xff pattern:$0x75316420]
      %815 = vrot.lane.b32.xlu0 %v812, 110
      %v816 = vpop.permute.xlu0 %815
      %817 = vrot.lane.b32.xlu0 %v813, 110
      %v818 = vpop.permute.xlu0 %817
      %819 = vrot.lane.b32.xlu0 %v814, 110
      %v820 = vpop.permute.xlu0 %819
      %vm821 = vcmask 900096
      %v822 = vsel %vm821, %v816, %v818
      %v823 = vsel %vm821, %v818, %v820
      %v825 = vsel %vm457, %v806, 0
      %v827 = vsel %vm432, %v822, 0
      %v829 = vsel %vm432, %v823, 0
      %831 = vmatpush.msra.mxu0 0.0
      %832 = vmatpush.msra.mxu0 0.0
      %833 = vmatpush.msra.mxu0 0.0
      %834 = vmatpush.msra.mxu0 0.0
      %835 = vmatpush.msra.mxu0 0.0
      %836 = vmatpush.msra.mxu0 0.0
      %837 = vmatpush.msra.mxu0 0.0
      %838 = vmatpush.msra.mxu0 0.0
      %839 = vmatpush.msra.mxu0 0.0
      %840 = vmatpush.msra.mxu0 0.0
      %841 = vmatpush.msra.mxu0 0.0
      %842 = vmatpush.msra.mxu0 0.0
      %843 = vmatpush.msra.mxu0 0.0
      %844 = vmatpush.msra.mxu0 0.0
      %845 = vmatpush.msra.mxu0 0.0
      %846 = vmatpush.msra.mxu0 %v827
      %847 = vmatmul.f32.gmra.mxu0 %v825
      %v848 = vpop.f32.mrf.mxu0
      %v849 = vadd.f32 0.0, %v848
      %850 = vdwg.mxu0
      %851 = vmatpush.msra.mxu0 0.0
      %852 = vmatpush.msra.mxu0 0.0
      %853 = vmatpush.msra.mxu0 0.0
      %854 = vmatpush.msra.mxu0 0.0
      %855 = vmatpush.msra.mxu0 0.0
      %856 = vmatpush.msra.mxu0 0.0
      %857 = vmatpush.msra.mxu0 0.0
      %858 = vmatpush.msra.mxu0 0.0
      %859 = vmatpush.msra.mxu0 0.0
      %860 = vmatpush.msra.mxu0 0.0
      %861 = vmatpush.msra.mxu0 0.0
      %862 = vmatpush.msra.mxu0 0.0
      %863 = vmatpush.msra.mxu0 0.0
      %864 = vmatpush.msra.mxu0 0.0
      %865 = vmatpush.msra.mxu0 0.0
      %866 = vmatpush.msra.mxu0 %v829
      %867 = vmatmul.f32.gmra.mxu0 %v825
      %v868 = vpop.f32.mrf.mxu0
      %v869 = vadd.f32 0.0, %v868
      %870 = vdwg.mxu0
      %v871 = vadd.f32 %v792, %v849
      %v872 = vadd.f32 %v793, %v869
      %v873 = vld [vmem:[%s4] sm:$0xff]
      %875 = vset.pattern.permute.xlu0 0
      %876 = vperm.xlu0 %875, %v873
      %v877 = vpop.permute.xlu0 %876
      %v879 = vadd.f32 %v871, %v877
      %v880 = vadd.f32 %v872, %v877
      %v881 = vlaneseq
      %v882 = vand.u32 %v881, 127
      %v883 = vadd.s32 %v882, 128
      %vm884 = vcmp.ge.s32.totalorder %v882, 16
      %vm885 = vcmp.ge.s32.totalorder %v883, 16
      %v886 = vsel %vm884, 1, 0
      %v887 = vsel %vm885, 1, 0
      %v888 = vcvt.s32.f32 %v886
      %v889 = vcvt.s32.f32 %v887
      %v890 = vmul.f32 %v879, %v888
      %v891 = vmul.f32 %v880, %v889
      %v892 = vtanh.pop %v890
      %v893 = vtanh.pop %v891
      %v894 = vxor.u32 %v890, 2147483648
      %v895 = vxor.u32 %v891, 2147483648
      %v896 = vmul.f32 %v894, 1.442695
      %v897 = vpow.pop %v896
      %v898 = vmul.f32 %v895, 1.442695
      %v899 = vpow.pop %v898
      %v900 = vadd.f32 %v897, 1.0
      %v901 = vadd.f32 %v899, 1.0
      %v902 = vrcp.pop %v900
      %v903 = vmul.f32 %v900, %v902
      %v904 = vsub.f32 1.0, %v903
      %v905 = vmul.f32 %v902, %v904
      %v906 = vadd.f32 %v902, %v905
      %vm907 = vweird.f32 %v900
      %vm908 = vweird.f32 %v902
      %vm909 = vmor %vm907, %vm908
      %v910 = vsel %vm909, %v902, %v906
      %v911 = vand.u32 2147483647, %v900
      %vm912 = vcmp.eq.f32.partialorder %v911, 8.507059e+37
      %v913 = vand.u32 %v900, 2147483648
      %v914 = vor.u32 1.1754944e-38, %v913
      %v915 = vsel %vm912, %v914, %v910
      %v916 = vmul.f32 1.0, %v915
      %v917 = vrcp.pop %v901
      %v918 = vmul.f32 %v901, %v917
      %v919 = vsub.f32 1.0, %v918
      %v920 = vmul.f32 %v917, %v919
      %v921 = vadd.f32 %v917, %v920
      %vm922 = vweird.f32 %v901
      %vm923 = vweird.f32 %v917
      %vm924 = vmor %vm922, %vm923
      %v925 = vsel %vm924, %v917, %v921
      %v926 = vand.u32 2147483647, %v901
      %vm927 = vcmp.eq.f32.partialorder %v926, 8.507059e+37
      %v928 = vand.u32 %v901, 2147483648
      %v929 = vor.u32 1.1754944e-38, %v928
      %v930 = vsel %vm927, %v929, %v925
      %v931 = vmul.f32 1.0, %v930
      %v934 = vrot.slane %v916, 4
      %v935 = vrot.slane %v931, 4
      %v938 = vmul.f32 %v892, %v934
      %v939 = vmul.f32 %v893, %v935
      %v942 = vrot.slane %v939, 4
      %v943 = vsel %vm432, %v938, %v942
      %945 = vst [vmem:[%s414] sm:$0xff] %v943
      %v946 = vld [vmem:[%s409] sm:$0xff]
      %v947 = vld [vmem:[%s409 + $0x8] sm:$0xf]
      %v948 = vld [vmem:[%s5] sm:$0xff]
      %v949 = vmul.f32 %v946, %v433
      %s950 = scalar_lea.vmem %s5, 8
      %v951 = vld [vmem:[%s950] sm:$0xff]
      %954 = vst [vmem:[#allocation1] ss:$2 sm:$0xff] %v946
      %s955 = scalar_lea.vmem [#allocation1], 16
      %956 = vst [vmem:[%s955] ss:$2 sm:$0xff] %v947
      %v957 = vld.sshfl [vmem:[#allocation1] sm:$0xff pattern:$0x75316420]
      %v958 = vld.sshfl [vmem:[#allocation1 + $0x8] sm:$0xff pattern:$0x75316420]
      %v959 = vld.sshfl [vmem:[#allocation1 + $0x10] sm:$0xff pattern:$0x75316420]
      %960 = vrot.lane.b32.xlu0 %v957, 127
      %v961 = vpop.permute.xlu0 %960
      %962 = vrot.lane.b32.xlu0 %v958, 127
      %v963 = vpop.permute.xlu0 %962
      %964 = vrot.lane.b32.xlu0 %v959, 127
      %v965 = vpop.permute.xlu0 %964
      %v966 = vsel %vm454, %v961, %v963
      %v967 = vsel %vm454, %v963, %v965
      %v969 = vsel %vm457, %v951, 0
      %v971 = vsel %vm432, %v966, 0
      %v973 = vsel %vm432, %v967, 0
      %975 = vmatpush.msra.mxu0 0.0
      %976 = vmatpush.msra.mxu0 0.0
      %977 = vmatpush.msra.mxu0 0.0
      %978 = vmatpush.msra.mxu0 0.0
      %979 = vmatpush.msra.mxu0 0.0
      %980 = vmatpush.msra.mxu0 0.0
      %981 = vmatpush.msra.mxu0 0.0
      %982 = vmatpush.msra.mxu0 0.0
      %983 = vmatpush.msra.mxu0 0.0
      %984 = vmatpush.msra.mxu0 0.0
      %985 = vmatpush.msra.mxu0 0.0
      %986 = vmatpush.msra.mxu0 0.0
      %987 = vmatpush.msra.mxu0 0.0
      %988 = vmatpush.msra.mxu0 0.0
      %989 = vmatpush.msra.mxu0 0.0
      %990 = vmatpush.msra.mxu0 %v971
      %991 = vmatmul.f32.gmra.mxu0 %v969
      %v992 = vpop.f32.mrf.mxu0
      %v993 = vadd.f32 0.0, %v992
      %994 = vdwg.mxu0
      %995 = vmatpush.msra.mxu0 0.0
      %996 = vmatpush.msra.mxu0 0.0
      %997 = vmatpush.msra.mxu0 0.0
      %998 = vmatpush.msra.mxu0 0.0
      %999 = vmatpush.msra.mxu0 0.0
      %1000 = vmatpush.msra.mxu0 0.0
      %1001 = vmatpush.msra.mxu0 0.0
      %1002 = vmatpush.msra.mxu0 0.0
      %1003 = vmatpush.msra.mxu0 0.0
      %1004 = vmatpush.msra.mxu0 0.0
      %1005 = vmatpush.msra.mxu0 0.0
      %1006 = vmatpush.msra.mxu0 0.0
      %1007 = vmatpush.msra.mxu0 0.0
      %1008 = vmatpush.msra.mxu0 0.0
      %1009 = vmatpush.msra.mxu0 0.0
      %1010 = vmatpush.msra.mxu0 %v973
      %1011 = vmatmul.f32.gmra.mxu0 %v969
      %v1012 = vpop.f32.mrf.mxu0
      %v1013 = vadd.f32 0.0, %v1012
      %1014 = vdwg.mxu0
      %1016 = vst [vmem:[#allocation1] ss:$2 sm:$0xff] %v949
      %v1017 = vld.sshfl [vmem:[#allocation1] sm:$0xff pattern:$0x75316420]
      %v1018 = vld.sshfl [vmem:[#allocation1 + $0x8] sm:$0xff pattern:$0x75316420]
      %v1020 = vsel %vm457, %v948, 0
      %v1022 = vsel %vm432, %v1017, 0
      %v1024 = vsel %vm432, %v1018, 0
      %1026 = vmatpush.msra.mxu0 0.0
      %1027 = vmatpush.msra.mxu0 0.0
      %1028 = vmatpush.msra.mxu0 0.0
      %1029 = vmatpush.msra.mxu0 0.0
      %1030 = vmatpush.msra.mxu0 0.0
      %1031 = vmatpush.msra.mxu0 0.0
      %1032 = vmatpush.msra.mxu0 0.0
      %1033 = vmatpush.msra.mxu0 0.0
      %1034 = vmatpush.msra.mxu0 0.0
      %1035 = vmatpush.msra.mxu0 0.0
      %1036 = vmatpush.msra.mxu0 0.0
      %1037 = vmatpush.msra.mxu0 0.0
      %1038 = vmatpush.msra.mxu0 0.0
      %1039 = vmatpush.msra.mxu0 0.0
      %1040 = vmatpush.msra.mxu0 0.0
      %1041 = vmatpush.msra.mxu0 %v1022
      %1042 = vmatmul.f32.gmra.mxu0 %v1020
      %v1043 = vpop.f32.mrf.mxu0
      %v1044 = vadd.f32 %v993, %v1043
      %1045 = vdwg.mxu0
      %1046 = vmatpush.msra.mxu0 0.0
      %1047 = vmatpush.msra.mxu0 0.0
      %1048 = vmatpush.msra.mxu0 0.0
      %1049 = vmatpush.msra.mxu0 0.0
      %1050 = vmatpush.msra.mxu0 0.0
      %1051 = vmatpush.msra.mxu0 0.0
      %1052 = vmatpush.msra.mxu0 0.0
      %1053 = vmatpush.msra.mxu0 0.0
      %1054 = vmatpush.msra.mxu0 0.0
      %1055 = vmatpush.msra.mxu0 0.0
      %1056 = vmatpush.msra.mxu0 0.0
      %1057 = vmatpush.msra.mxu0 0.0
      %1058 = vmatpush.msra.mxu0 0.0
      %1059 = vmatpush.msra.mxu0 0.0
      %1060 = vmatpush.msra.mxu0 0.0
      %1061 = vmatpush.msra.mxu0 %v1024
      %1062 = vmatmul.f32.gmra.mxu0 %v1020
      %v1063 = vpop.f32.mrf.mxu0
      %v1064 = vadd.f32 %v1013, %v1063
      %1065 = vdwg.mxu0
      %v1066 = vld [vmem:[%s7] sm:$0xff]
      %vm1067 = vcmask 64512
      %v1069 = vsel %vm1067, %v1066, 0
      %1071 = vmatpush.msra.mxu0 0.0
      %1072 = vmatpush.msra.mxu0 0.0
      %1073 = vmatpush.msra.mxu0 0.0
      %1074 = vmatpush.msra.mxu0 0.0
      %1075 = vmatpush.msra.mxu0 0.0
      %1076 = vmatpush.msra.mxu0 0.0
      %1077 = vmatpush.msra.mxu0 0.0
      %1078 = vmatpush.msra.mxu0 0.0
      %1079 = vmatpush.msra.mxu0 0.0
      %1080 = vmatpush.msra.mxu0 0.0
      %1081 = vmatpush.msra.mxu0 0.0
      %1082 = vmatpush.msra.mxu0 0.0
      %1083 = vmatpush.msra.mxu0 0.0
      %1084 = vmatpush.msra.mxu0 0.0
      %1085 = vmatpush.msra.mxu0 0.0
      %1086 = vmatpush.msra.mxu0 %v890
      %1087 = vmatmul.f32.gmra.mxu0 %v1069
      %v1088 = vpop.f32.mrf.mxu0
      %v1089 = vadd.f32 0.0, %v1088
      %1090 = vdwg.mxu0
      %1091 = vmatpush.msra.mxu0 0.0
      %1092 = vmatpush.msra.mxu0 0.0
      %1093 = vmatpush.msra.mxu0 0.0
      %1094 = vmatpush.msra.mxu0 0.0
      %1095 = vmatpush.msra.mxu0 0.0
      %1096 = vmatpush.msra.mxu0 0.0
      %1097 = vmatpush.msra.mxu0 0.0
      %1098 = vmatpush.msra.mxu0 0.0
      %1099 = vmatpush.msra.mxu0 0.0
      %1100 = vmatpush.msra.mxu0 0.0
      %1101 = vmatpush.msra.mxu0 0.0
      %1102 = vmatpush.msra.mxu0 0.0
      %1103 = vmatpush.msra.mxu0 0.0
      %1104 = vmatpush.msra.mxu0 0.0
      %1105 = vmatpush.msra.mxu0 0.0
      %1106 = vmatpush.msra.mxu0 %v891
      %1107 = vmatmul.f32.gmra.mxu0 %v1069
      %v1108 = vpop.f32.mrf.mxu0
      %v1109 = vadd.f32 0.0, %v1108
      %1110 = vdwg.mxu0
      %v1111 = vadd.f32 %v1044, %v1089
      %v1112 = vadd.f32 %v1064, %v1109
      %v1113 = vld [vmem:[%s6] sm:$0xff]
      %1115 = vset.pattern.permute.xlu0 0
      %1116 = vperm.xlu0 %1115, %v1113
      %v1117 = vpop.permute.xlu0 %1116
      %v1119 = vadd.f32 %v1111, %v1117
      %v1120 = vadd.f32 %v1112, %v1117
      %v1121 = vtanh.pop %v1119
      %v1122 = vtanh.pop %v1120
      %v1123 = vxor.u32 %v1119, 2147483648
      %v1124 = vxor.u32 %v1120, 2147483648
      %v1125 = vmul.f32 %v1123, 1.442695
      %v1126 = vpow.pop %v1125
      %v1127 = vmul.f32 %v1124, 1.442695
      %v1128 = vpow.pop %v1127
      %v1129 = vadd.f32 %v1126, 1.0
      %v1130 = vadd.f32 %v1128, 1.0
      %v1131 = vrcp.pop %v1129
      %v1132 = vmul.f32 %v1129, %v1131
      %v1133 = vsub.f32 1.0, %v1132
      %v1134 = vmul.f32 %v1131, %v1133
      %v1135 = vadd.f32 %v1131, %v1134
      %vm1136 = vweird.f32 %v1129
      %vm1137 = vweird.f32 %v1131
      %vm1138 = vmor %vm1136, %vm1137
      %v1139 = vsel %vm1138, %v1131, %v1135
      %v1140 = vand.u32 2147483647, %v1129
      %vm1141 = vcmp.eq.f32.partialorder %v1140, 8.507059e+37
      %v1142 = vand.u32 %v1129, 2147483648
      %v1143 = vor.u32 1.1754944e-38, %v1142
      %v1144 = vsel %vm1141, %v1143, %v1139
      %v1145 = vmul.f32 1.0, %v1144
      %v1146 = vrcp.pop %v1130
      %v1147 = vmul.f32 %v1130, %v1146
      %v1148 = vsub.f32 1.0, %v1147
      %v1149 = vmul.f32 %v1146, %v1148
      %v1150 = vadd.f32 %v1146, %v1149
      %vm1151 = vweird.f32 %v1130
      %vm1152 = vweird.f32 %v1146
      %vm1153 = vmor %vm1151, %vm1152
      %v1154 = vsel %vm1153, %v1146, %v1150
      %v1155 = vand.u32 2147483647, %v1130
      %vm1156 = vcmp.eq.f32.partialorder %v1155, 8.507059e+37
      %v1157 = vand.u32 %v1130, 2147483648
      %v1158 = vor.u32 1.1754944e-38, %v1157
      %v1159 = vsel %vm1156, %v1158, %v1154
      %v1160 = vmul.f32 1.0, %v1159
      %v1163 = vrot.slane %v1145, 4
      %v1164 = vrot.slane %v1160, 4
      %v1167 = vmul.f32 %v1121, %v1163
      %v1168 = vmul.f32 %v1122, %v1164
      %v1169 = vld [vmem:[%s8] sm:$0xf]
      %v1170 = vld [vmem:[%s9] sm:$0xf]
      %1172 = vset.pattern.permute.xlu0 0
      %1173 = vperm.xlu0 %1172, %v1170
      %v1174 = vpop.permute.xlu0 %1173
      %v1177 = vsel %vm457, %v1169, 0
      %v1180 = vsel %vm432, %v1167, 0
      %v1183 = vsel %vm432, %v1168, 0
      %1185 = vmatpush.msra.mxu0 0.0
      %1186 = vmatpush.msra.mxu0 0.0
      %1187 = vmatpush.msra.mxu0 0.0
      %1188 = vmatpush.msra.mxu0 0.0
      %1189 = vmatpush.msra.mxu0 0.0
      %1190 = vmatpush.msra.mxu0 0.0
      %1191 = vmatpush.msra.mxu0 0.0
      %1192 = vmatpush.msra.mxu0 0.0
      %1193 = vmatpush.msra.mxu0 0.0
      %1194 = vmatpush.msra.mxu0 0.0
      %1195 = vmatpush.msra.mxu0 0.0
      %1196 = vmatpush.msra.mxu0 0.0
      %1197 = vmatpush.msra.mxu0 0.0
      %1198 = vmatpush.msra.mxu0 0.0
      %1199 = vmatpush.msra.mxu0 0.0
      %1200 = vmatpush.msra.mxu0 %v1180
      %1201 = vmatmul.f32.gmra.mxu0 %v1177
      %v1202 = vpop.f32.mrf.mxu0
      %v1203 = vadd.f32 %v1174, %v1202
      %1204 = vdwg.mxu0
      %1205 = vmatpush.msra.mxu0 0.0
      %1206 = vmatpush.msra.mxu0 0.0
      %1207 = vmatpush.msra.mxu0 0.0
      %1208 = vmatpush.msra.mxu0 0.0
      %1209 = vmatpush.msra.mxu0 0.0
      %1210 = vmatpush.msra.mxu0 0.0
      %1211 = vmatpush.msra.mxu0 0.0
      %1212 = vmatpush.msra.mxu0 0.0
      %1213 = vmatpush.msra.mxu0 0.0
      %1214 = vmatpush.msra.mxu0 0.0
      %1215 = vmatpush.msra.mxu0 0.0
      %1216 = vmatpush.msra.mxu0 0.0
      %1217 = vmatpush.msra.mxu0 0.0
      %1218 = vmatpush.msra.mxu0 0.0
      %1219 = vmatpush.msra.mxu0 0.0
      %1220 = vmatpush.msra.mxu0 %v1183
      %1221 = vmatmul.f32.gmra.mxu0 %v1177
      %v1222 = vpop.f32.mrf.mxu0
      %v1223 = vadd.f32 %v1174, %v1222
      %1224 = vdwg.mxu0
      %1225 = vst [vmem:[#allocation1] ss:$2 sm:$0xff] %v946
      %s1226 = scalar_lea.vmem [#allocation1], 16
      %1227 = vst [vmem:[%s1226] ss:$2 sm:$0xff] %v947
      %v1228 = vld.sshfl [vmem:[#allocation1] sm:$0xff pattern:$0x75316420]
      %v1229 = vld.sshfl [vmem:[#allocation1 + $0x8] sm:$0xff pattern:$0x75316420]
      %v1230 = vld.sshfl [vmem:[#allocation1 + $0x10] sm:$0xff pattern:$0x75316420]
      %1231 = vrot.lane.b32.xlu0 %v1228, 127
      %v1232 = vpop.permute.xlu0 %1231
      %1233 = vrot.lane.b32.xlu0 %v1229, 127
      %v1234 = vpop.permute.xlu0 %1233
      %1235 = vrot.lane.b32.xlu0 %v1230, 127
      %v1236 = vpop.permute.xlu0 %1235
      %v1237 = vsel %vm454, %v1232, %v1234
      %v1238 = vsel %vm454, %v1234, %v1236
      %v1241 = vadd.f32 %v1203, %v1237
      %v1242 = vadd.f32 %v1223, %v1238
      %v1245 = vrot.slane %v1242, 4
      %v1246 = vsel %vm432, %v1241, %v1245
      %1248 = vst [vmem:[%s419] sm:$0xff] %v1246
      %p1249 = scmp.lt.s32.totalorder %s23, 1
      %s1250 = scalar_select %p1249, %s23, 1
      %s1251 = smul.addr %s1250, 2
      %s1252 = smul.addr %s1251, 4
      %s1253 = scalar_lea.vmem %s10, %s1252
      %p1254 = scmp.lt.s32.totalorder %s23, 1
      %s1255 = scalar_select %p1254, %s23, 1
      %s1256 = smul.addr %s1255, 2
      %s1257 = smul.addr %s1256, 4
      %s1258 = scalar_lea.vmem %s11, %s1257
      // Predicated region
      $region61: #{gated_masked_conv2d.1} parent=59 // pred_check
        %p1259 = pneg %p261
      $region62: #{gated_masked_conv2d.1} parent=59 // pred_check_branch
        %1261 = sbr.rel (%p1259) target = $region64
      $region63: #{gated_masked_conv2d.1} parent=59 // pred_region
        _
      $region64: #{gated_masked_conv2d.1} parent=59 // pred_fallthru
        _
      // Predicated region
      $region65: #{gated_masked_conv2d.1} parent=59 // pred_check
        %p1262 = pneg %p287
      $region66: #{gated_masked_conv2d.1} parent=59 // pred_check_branch
        %1264 = sbr.rel (%p1262) target = $region68
      $region67: #{gated_masked_conv2d.1} parent=59 // pred_region
        _
      $region68: #{gated_masked_conv2d.1} parent=59 // pred_fallthru
        _
    $region60: #{gated_masked_conv2d.1} parent=5 // pred_fallthru
      _
    %p1265 = scmp.le.s32.totalorder 2, %s18
    // Predicated region
    $region69: #{gated_masked_conv2d.1} parent=5 // pred_check
      %p1266 = pneg %p1265
    $region70: #{gated_masked_conv2d.1} parent=5 // pred_check_branch
      %1268 = sbr.rel (%p1266) target = $region72
    $region71: #{gated_masked_conv2d.1} parent=5 // pred_region
      %s1269 = ssub.s32 %s18, 2
      // Predicated region
      $region73: #{gated_masked_conv2d.1} parent=71 // pred_check
        %p1270 = pneg %p267
      $region74: #{gated_masked_conv2d.1} parent=71 // pred_check_branch
        %1272 = sbr.rel (%p1270) target = $region76
      $region75: #{gated_masked_conv2d.1} parent=71 // pred_region
        %p1273 = scmp.lt.s32.totalorder %s24, 1
        %s1274 = scalar_select %p1273, %s24, 1
        %s1275 = smul.addr %s1274, 2
        %s1276 = smul.addr %s1275, 4
        %s1277 = scalar_lea.vmem %s10, %s1276
      $region76: #{gated_masked_conv2d.1} parent=71 // pred_fallthru
        _
      // Predicated region
      $region77: #{gated_masked_conv2d.1} parent=71 // pred_check
        %p1278 = pneg %p293
      $region78: #{gated_masked_conv2d.1} parent=71 // pred_check_branch
        %1280 = sbr.rel (%p1278) target = $region80
      $region79: #{gated_masked_conv2d.1} parent=71 // pred_region
        %p1281 = scmp.lt.s32.totalorder %s24, 1
        %s1282 = scalar_select %p1281, %s24, 1
        %s1283 = smul.addr %s1282, 2
        %s1284 = smul.addr %s1283, 4
        %s1285 = scalar_lea.vmem %s11, %s1284
      $region80: #{gated_masked_conv2d.1} parent=71 // pred_fallthru
        _
    $region72: #{gated_masked_conv2d.1} parent=5 // pred_fallthru
      _
  $region6: #{gated_masked_conv2d.1} parent=0 // loop_footer
    %s22 = sadd.s32 1, %s18
  $region7: #{gated_masked_conv2d.1} parent=0 // loop_footer_branch
    %17 = sbr.rel target = $region3
  $region8: #{gated_masked_conv2d.1} parent=0 // loop_exit
    _

</llo_original>
